<compile_context>
chip_gen: v7x
topology: tpu7x:2x2x1
jax: 0.10.0
libtpu: 0.0.40
codegen_flags: <defaults>
</compile_context>

<pallas_src>
import math

import jax
import jax.numpy as jnp
from jax.experimental import pallas as pl
from jax.experimental.pallas import tpu as pltpu

# ---- model config (small, consistent with EncoderLayer(d_model, heads, dff)) ----
B = 2        # batch
S = 8        # sequence length
D_MODEL = 32
HEADS = 4
D_FF = 64
D_K = D_MODEL // HEADS
LN_EPS = 1e-5
MATMUL_DTYPE = jnp.bfloat16   # MXU-native matmul-input dtype; accumulation is f32


def _layernorm(z, g, b):
    mu = jnp.mean(z, axis=-1, keepdims=True)
    var = jnp.mean((z - mu) ** 2, axis=-1, keepdims=True)   # biased var (PyTorch LN)
    return (z - mu) * jax.lax.rsqrt(var + LN_EPS) * g + b


def encoder_layer_kernel(
    x_ref,
    wqkv_ref, bqkv_ref, wo_ref, bo_ref,
    g1_ref, be1_ref,
    w1_ref, b1_ref, w2_ref, b2_ref,
    o_ref,
):
    bb, s, d = x_ref.shape
    x = x_ref[...].reshape(bb * s, d)                       # (BB*S, D), f32

    # ---- fused QKV projection: one MXU matmul instead of three ------------
    qkv = (
        jnp.dot(x.astype(MATMUL_DTYPE), wqkv_ref[...].astype(MATMUL_DTYPE),
                preferred_element_type=jnp.float32)
        + bqkv_ref[...]
    )                                                       # (BB*S, 3*D)
    q, k, v = qkv[:, :d], qkv[:, d:2 * d], qkv[:, 2 * d:]

    # ---- head-batched attention --------------------------------------------
    # Build a (BB*HEADS, S, D_K) batch once (static, intra-vreg slices at D=32
    # lanes); all per-head matmuls then run as batched einsums and the softmax
    # statistics are single batched reductions, instead of a per-head loop.
    def split_heads(t):
        return jnp.stack(
            [t[b * s:(b + 1) * s, h * D_K:(h + 1) * D_K]
             for b in range(bb) for h in range(HEADS)],
            axis=0,
        ).astype(MATMUL_DTYPE)

    qh, kh, vh = split_heads(q), split_heads(k), split_heads(v)

    scale = 1.0 / math.sqrt(D_K)
    sc = jnp.einsum("bqd,bkd->bqk", qh, kh,
                    preferred_element_type=jnp.float32) * scale      # (BB*H, S, S)
    sc = sc - jnp.max(sc, axis=-1, keepdims=True)                    # one batched max
    e = jnp.exp(sc)
    p = e * pl.reciprocal(jnp.sum(e, axis=-1, keepdims=True), approx=True)
    oh = jnp.einsum("bqk,bkd->bqd", p.astype(MATMUL_DTYPE), vh,
                    preferred_element_type=jnp.float32)              # (BB*H, S, D_K)

    concat = jnp.concatenate(
        [jnp.concatenate([oh[b * HEADS + h] for h in range(HEADS)], axis=-1)
         for b in range(bb)],
        axis=0,
    )                                                                # (BB*S, D)

    attn_out = (
        jnp.dot(concat.astype(MATMUL_DTYPE), wo_ref[...].astype(MATMUL_DTYPE),
                preferred_element_type=jnp.float32)
        + bo_ref[...]
    )

    # ---- residual + layernorm (norm_1) --------------------------------------
    out1 = _layernorm(x + attn_out, g1_ref[...], be1_ref[...])

    # ---- feed-forward --------------------------------------------------------
    h1 = jnp.maximum(
        jnp.dot(out1.astype(MATMUL_DTYPE), w1_ref[...].astype(MATMUL_DTYPE),
                preferred_element_type=jnp.float32) + b1_ref[...],
        0.0,
    )
    ffn = (
        jnp.dot(h1.astype(MATMUL_DTYPE), w2_ref[...].astype(MATMUL_DTYPE),
                preferred_element_type=jnp.float32)
        + b2_ref[...]
    )

    # NOTE: reference forward reuses norm_1 for the second norm (norm_2 unused).
    out2 = _layernorm(out1 + ffn, g1_ref[...], be1_ref[...])

    o_ref[...] = out2.reshape(bb, s, d).astype(o_ref.dtype)


def _dual_tensorcore_chip():
    """True on v7x (2 TensorCores/chip); False (or on any failure) otherwise."""
    try:
        kind = jax.devices()[0].device_kind.lower()
    except Exception:
        return False
    return ("v7" in kind) or ("7x" in kind)


def encoder_layer(x, params, mask=None, *, batch_parallel=None):
    """x: (B, S, D_MODEL) float32. mask is accepted but unused (matches reference)."""
    del mask
    b, s, d = x.shape
    assert (s, d) == (S, D_MODEL)

    if batch_parallel is None:
        # v5e/v6e: 1 TensorCore -> a batch grid is pure serial per-step overhead,
        # so collapse to a single step holding the whole (B, S, D) block.
        # v7x: 2 TensorCores -> keep grid=(B,) "parallel" so each core takes one seq.
        batch_parallel = _dual_tensorcore_chip() and b > 1

    if batch_parallel:
        grid = (b,)
        blk_b = 1
        io_map = lambda i: (i, 0, 0)
        semantics = ("parallel",)
    else:
        grid = (1,)
        blk_b = b
        io_map = lambda i: (0, 0, 0)
        semantics = ("arbitrary",)

    def full2d(shape):
        return pl.BlockSpec(shape, lambda i: (0, 0))

    weight_specs = [
        full2d((D_MODEL, 3 * D_MODEL)), full2d((1, 3 * D_MODEL)),   # wqkv, bqkv
        full2d((D_MODEL, D_MODEL)), full2d((1, D_MODEL)),           # wo, bo
        full2d((1, D_MODEL)), full2d((1, D_MODEL)),                 # ln gamma, beta
        full2d((D_MODEL, D_FF)), full2d((1, D_FF)),                 # w1, b1
        full2d((D_FF, D_MODEL)), full2d((1, D_MODEL)),              # w2, b2
    ]

    # Advisory cost estimate: this kernel is tiny and launch/latency bound;
    # let XLA schedule surrounding ops around it.
    flops = (
        2 * b * s * D_MODEL * (3 * D_MODEL + D_MODEL + 2 * D_FF)    # QKV + out + FFN
        + 2 * 2 * b * HEADS * s * s * D_K                           # qk^T and p@v
    )
    transcendentals = b * HEADS * s * s + 3 * b * s
    bytes_accessed = 4 * (2 * b * s * D_MODEL + sum(int(p.size) for p in params))

    return pl.pallas_call(
        encoder_layer_kernel,
        out_shape=jax.ShapeDtypeStruct((b, S, D_MODEL), x.dtype),
        grid_spec=pltpu.PrefetchScalarGridSpec(
            num_scalar_prefetch=0,
            grid=grid,
            in_specs=[pl.BlockSpec((blk_b, S, D_MODEL), io_map)] + weight_specs,
            out_specs=pl.BlockSpec((blk_b, S, D_MODEL), io_map),
        ),
        compiler_params=pltpu.CompilerParams(dimension_semantics=semantics),
        cost_estimate=pl.CostEstimate(
            flops=flops,
            transcendentals=transcendentals,
            bytes_accessed=bytes_accessed,
        ),
    )(x, *params)


def init_params(key):
    """Deterministic parameter init. PyTorch Linear weights are (out, in); we
    store them pre-transposed as (in, out) so the kernel does x @ W + b.
    Wq|Wk|Wv (and biases) are packed into one fused QKV weight."""
    ks = jax.random.split(key, 12)
    scale = 0.1

    def lin(kw, kb, fan_in, fan_out):
        w = scale * jax.random.normal(kw, (fan_in, fan_out), jnp.float32)
        b = scale * jax.random.normal(kb, (1, fan_out), jnp.float32)
        return w, b

    wq, bq = lin(ks[0], ks[1], D_MODEL, D_MODEL)
    wk, bk = lin(ks[2], ks[3], D_MODEL, D_MODEL)
    wv, bv = lin(ks[4], ks[5], D_MODEL, D_MODEL)
    wqkv = jnp.concatenate([wq, wk, wv], axis=1)          # (D, 3D)
    bqkv = jnp.concatenate([bq, bk, bv], axis=1)          # (1, 3D)
    wo, bo = lin(ks[6], ks[7], D_MODEL, D_MODEL)
    g1 = jnp.ones((1, D_MODEL), jnp.float32)              # LayerNorm default init
    be1 = jnp.zeros((1, D_MODEL), jnp.float32)
    w1, b1 = lin(ks[8], ks[9], D_MODEL, D_FF)
    w2, b2 = lin(ks[10], ks[11], D_FF, D_MODEL)
    return (wqkv, bqkv, wo, bo, g1, be1, w1, b1, w2, b2)


if __name__ == "__main__":
    key = jax.random.PRNGKey(0)
    kx, kp = jax.random.split(key)
    x = jax.random.normal(kx, (B, S, D_MODEL), jnp.float32)
    mask = jnp.ones((B, S, S), jnp.float32)   # unused, mirrors the PyTorch signature
    params = init_params(kp)

    out = encoder_layer(x, params, mask)
    jax.block_until_ready(out)
    assert out.shape == (B, S, D_MODEL)
    print("KERNEL_OK")
</pallas_src>

<mosaic_0001>
module attributes {stable_mosaic.version = 11 : i64} {
  func.func @encoder_layer_kernel(%arg0: i32, %arg1: memref<2x8x32xf32, #tpu.memory_space<vmem>>, %arg2: memref<32x96xf32, #tpu.memory_space<vmem>>, %arg3: memref<1x96xf32, #tpu.memory_space<vmem>>, %arg4: memref<32x32xf32, #tpu.memory_space<vmem>>, %arg5: memref<1x32xf32, #tpu.memory_space<vmem>>, %arg6: memref<1x32xf32, #tpu.memory_space<vmem>>, %arg7: memref<1x32xf32, #tpu.memory_space<vmem>>, %arg8: memref<32x64xf32, #tpu.memory_space<vmem>>, %arg9: memref<1x64xf32, #tpu.memory_space<vmem>>, %arg10: memref<64x32xf32, #tpu.memory_space<vmem>>, %arg11: memref<1x32xf32, #tpu.memory_space<vmem>>, %arg12: memref<2x8x32xf32, #tpu.memory_space<vmem>>) attributes {dimension_semantics = [#tpu.dimension_semantics<arbitrary>], iteration_bounds = array<i64: 1>, scalar_prefetch = 0 : i64, scratch_operands = 0 : i64, tpu.core_type = #tpu.core_type<tc>, window_params = [{pipeline_mode = #tpu.pipeline_mode<synchronous>, transform_indices = @transform_0, window_bounds = array<i64: 2, 8, 32>}, {pipeline_mode = #tpu.pipeline_mode<synchronous>, transform_indices = @transform_1, window_bounds = array<i64: 32, 96>}, {pipeline_mode = #tpu.pipeline_mode<synchronous>, transform_indices = @transform_2, window_bounds = array<i64: 1, 96>}, {pipeline_mode = #tpu.pipeline_mode<synchronous>, transform_indices = @transform_3, window_bounds = array<i64: 32, 32>}, {pipeline_mode = #tpu.pipeline_mode<synchronous>, transform_indices = @transform_4, window_bounds = array<i64: 1, 32>}, {pipeline_mode = #tpu.pipeline_mode<synchronous>, transform_indices = @transform_5, window_bounds = array<i64: 1, 32>}, {pipeline_mode = #tpu.pipeline_mode<synchronous>, transform_indices = @transform_6, window_bounds = array<i64: 1, 32>}, {pipeline_mode = #tpu.pipeline_mode<synchronous>, transform_indices = @transform_7, window_bounds = array<i64: 32, 64>}, {pipeline_mode = #tpu.pipeline_mode<synchronous>, transform_indices = @transform_8, window_bounds = array<i64: 1, 64>}, {pipeline_mode = #tpu.pipeline_mode<synchronous>, transform_indices = @transform_9, window_bounds = array<i64: 64, 32>}, {pipeline_mode = #tpu.pipeline_mode<synchronous>, transform_indices = @transform_10, window_bounds = array<i64: 1, 32>}, {pipeline_mode = #tpu.pipeline_mode<synchronous>, transform_indices = @transform_11, window_bounds = array<i64: 2, 8, 32>}]} {
    %c0 = arith.constant 0 : index
    %c0_0 = arith.constant 0 : index
    %c0_1 = arith.constant 0 : index
    %0 = vector.load %arg1[%c0, %c0_0, %c0_1] : memref<2x8x32xf32, #tpu.memory_space<vmem>>, vector<2x8x32xf32>
    %1 = vector.shape_cast %0 : vector<2x8x32xf32> to vector<16x32xf32>
    %2 = arith.truncf %1 : vector<16x32xf32> to vector<16x32xbf16>
    %c0_2 = arith.constant 0 : index
    %c0_3 = arith.constant 0 : index
    %3 = vector.load %arg2[%c0_2, %c0_3] : memref<32x96xf32, #tpu.memory_space<vmem>>, vector<32x96xf32>
    %4 = arith.truncf %3 : vector<32x96xf32> to vector<32x96xbf16>
    %cst = arith.constant dense<0.000000e+00> : vector<16x96xf32>
    %5 = tpu.matmul %2, %4, %cst {dimension_numbers = #tpu.dot_dimension_numbers<[1], [0], [0], [1], [0, 0, 1, 1], [], []>} : vector<16x32xbf16>, vector<32x96xbf16>, vector<16x96xf32> -> vector<16x96xf32>
    %c0_4 = arith.constant 0 : index
    %c0_5 = arith.constant 0 : index
    %6 = vector.load %arg3[%c0_4, %c0_5] : memref<1x96xf32, #tpu.memory_space<vmem>>, vector<1x96xf32>
    %7 = vector.broadcast %6 : vector<1x96xf32> to vector<16x96xf32>
    %8 = arith.addf %5, %7 : vector<16x96xf32>
    %9 = vector.extract_strided_slice %8 {offsets = [0, 0], sizes = [16, 32], strides = [1, 1]} : vector<16x96xf32> to vector<16x32xf32>
    %10 = vector.extract_strided_slice %8 {offsets = [0, 32], sizes = [16, 32], strides = [1, 1]} : vector<16x96xf32> to vector<16x32xf32>
    %11 = vector.extract_strided_slice %8 {offsets = [0, 64], sizes = [16, 32], strides = [1, 1]} : vector<16x96xf32> to vector<16x32xf32>
    %12 = vector.extract_strided_slice %9 {offsets = [0, 0], sizes = [8, 8], strides = [1, 1]} : vector<16x32xf32> to vector<8x8xf32>
    %13 = vector.extract_strided_slice %9 {offsets = [0, 8], sizes = [8, 8], strides = [1, 1]} : vector<16x32xf32> to vector<8x8xf32>
    %14 = vector.extract_strided_slice %9 {offsets = [0, 16], sizes = [8, 8], strides = [1, 1]} : vector<16x32xf32> to vector<8x8xf32>
    %15 = vector.extract_strided_slice %9 {offsets = [0, 24], sizes = [8, 8], strides = [1, 1]} : vector<16x32xf32> to vector<8x8xf32>
    %16 = vector.extract_strided_slice %9 {offsets = [8, 0], sizes = [8, 8], strides = [1, 1]} : vector<16x32xf32> to vector<8x8xf32>
    %17 = vector.extract_strided_slice %9 {offsets = [8, 8], sizes = [8, 8], strides = [1, 1]} : vector<16x32xf32> to vector<8x8xf32>
    %18 = vector.extract_strided_slice %9 {offsets = [8, 16], sizes = [8, 8], strides = [1, 1]} : vector<16x32xf32> to vector<8x8xf32>
    %19 = vector.extract_strided_slice %9 {offsets = [8, 24], sizes = [8, 8], strides = [1, 1]} : vector<16x32xf32> to vector<8x8xf32>
    %20 = vector.shape_cast %12 : vector<8x8xf32> to vector<1x8x8xf32>
    %21 = vector.shape_cast %13 : vector<8x8xf32> to vector<1x8x8xf32>
    %22 = vector.shape_cast %14 : vector<8x8xf32> to vector<1x8x8xf32>
    %23 = vector.shape_cast %15 : vector<8x8xf32> to vector<1x8x8xf32>
    %24 = vector.shape_cast %16 : vector<8x8xf32> to vector<1x8x8xf32>
    %25 = vector.shape_cast %17 : vector<8x8xf32> to vector<1x8x8xf32>
    %26 = vector.shape_cast %18 : vector<8x8xf32> to vector<1x8x8xf32>
    %27 = vector.shape_cast %19 : vector<8x8xf32> to vector<1x8x8xf32>
    %28 = tpu.concatenate %20, %21, %22, %23, %24, %25, %26, %27 in 0 : vector<1x8x8xf32>, vector<1x8x8xf32>, vector<1x8x8xf32>, vector<1x8x8xf32>, vector<1x8x8xf32>, vector<1x8x8xf32>, vector<1x8x8xf32>, vector<1x8x8xf32> -> vector<8x8x8xf32>
    %29 = arith.truncf %28 : vector<8x8x8xf32> to vector<8x8x8xbf16>
    %30 = vector.extract_strided_slice %10 {offsets = [0, 0], sizes = [8, 8], strides = [1, 1]} : vector<16x32xf32> to vector<8x8xf32>
    %31 = vector.extract_strided_slice %10 {offsets = [0, 8], sizes = [8, 8], strides = [1, 1]} : vector<16x32xf32> to vector<8x8xf32>
    %32 = vector.extract_strided_slice %10 {offsets = [0, 16], sizes = [8, 8], strides = [1, 1]} : vector<16x32xf32> to vector<8x8xf32>
    %33 = vector.extract_strided_slice %10 {offsets = [0, 24], sizes = [8, 8], strides = [1, 1]} : vector<16x32xf32> to vector<8x8xf32>
    %34 = vector.extract_strided_slice %10 {offsets = [8, 0], sizes = [8, 8], strides = [1, 1]} : vector<16x32xf32> to vector<8x8xf32>
    %35 = vector.extract_strided_slice %10 {offsets = [8, 8], sizes = [8, 8], strides = [1, 1]} : vector<16x32xf32> to vector<8x8xf32>
    %36 = vector.extract_strided_slice %10 {offsets = [8, 16], sizes = [8, 8], strides = [1, 1]} : vector<16x32xf32> to vector<8x8xf32>
    %37 = vector.extract_strided_slice %10 {offsets = [8, 24], sizes = [8, 8], strides = [1, 1]} : vector<16x32xf32> to vector<8x8xf32>
    %38 = vector.shape_cast %30 : vector<8x8xf32> to vector<1x8x8xf32>
    %39 = vector.shape_cast %31 : vector<8x8xf32> to vector<1x8x8xf32>
    %40 = vector.shape_cast %32 : vector<8x8xf32> to vector<1x8x8xf32>
    %41 = vector.shape_cast %33 : vector<8x8xf32> to vector<1x8x8xf32>
    %42 = vector.shape_cast %34 : vector<8x8xf32> to vector<1x8x8xf32>
    %43 = vector.shape_cast %35 : vector<8x8xf32> to vector<1x8x8xf32>
    %44 = vector.shape_cast %36 : vector<8x8xf32> to vector<1x8x8xf32>
    %45 = vector.shape_cast %37 : vector<8x8xf32> to vector<1x8x8xf32>
    %46 = tpu.concatenate %38, %39, %40, %41, %42, %43, %44, %45 in 0 : vector<1x8x8xf32>, vector<1x8x8xf32>, vector<1x8x8xf32>, vector<1x8x8xf32>, vector<1x8x8xf32>, vector<1x8x8xf32>, vector<1x8x8xf32>, vector<1x8x8xf32> -> vector<8x8x8xf32>
    %47 = arith.truncf %46 : vector<8x8x8xf32> to vector<8x8x8xbf16>
    %48 = vector.extract_strided_slice %11 {offsets = [0, 0], sizes = [8, 8], strides = [1, 1]} : vector<16x32xf32> to vector<8x8xf32>
    %49 = vector.extract_strided_slice %11 {offsets = [0, 8], sizes = [8, 8], strides = [1, 1]} : vector<16x32xf32> to vector<8x8xf32>
    %50 = vector.extract_strided_slice %11 {offsets = [0, 16], sizes = [8, 8], strides = [1, 1]} : vector<16x32xf32> to vector<8x8xf32>
    %51 = vector.extract_strided_slice %11 {offsets = [0, 24], sizes = [8, 8], strides = [1, 1]} : vector<16x32xf32> to vector<8x8xf32>
    %52 = vector.extract_strided_slice %11 {offsets = [8, 0], sizes = [8, 8], strides = [1, 1]} : vector<16x32xf32> to vector<8x8xf32>
    %53 = vector.extract_strided_slice %11 {offsets = [8, 8], sizes = [8, 8], strides = [1, 1]} : vector<16x32xf32> to vector<8x8xf32>
    %54 = vector.extract_strided_slice %11 {offsets = [8, 16], sizes = [8, 8], strides = [1, 1]} : vector<16x32xf32> to vector<8x8xf32>
    %55 = vector.extract_strided_slice %11 {offsets = [8, 24], sizes = [8, 8], strides = [1, 1]} : vector<16x32xf32> to vector<8x8xf32>
    %56 = vector.shape_cast %48 : vector<8x8xf32> to vector<1x8x8xf32>
    %57 = vector.shape_cast %49 : vector<8x8xf32> to vector<1x8x8xf32>
    %58 = vector.shape_cast %50 : vector<8x8xf32> to vector<1x8x8xf32>
    %59 = vector.shape_cast %51 : vector<8x8xf32> to vector<1x8x8xf32>
    %60 = vector.shape_cast %52 : vector<8x8xf32> to vector<1x8x8xf32>
    %61 = vector.shape_cast %53 : vector<8x8xf32> to vector<1x8x8xf32>
    %62 = vector.shape_cast %54 : vector<8x8xf32> to vector<1x8x8xf32>
    %63 = vector.shape_cast %55 : vector<8x8xf32> to vector<1x8x8xf32>
    %64 = tpu.concatenate %56, %57, %58, %59, %60, %61, %62, %63 in 0 : vector<1x8x8xf32>, vector<1x8x8xf32>, vector<1x8x8xf32>, vector<1x8x8xf32>, vector<1x8x8xf32>, vector<1x8x8xf32>, vector<1x8x8xf32>, vector<1x8x8xf32> -> vector<8x8x8xf32>
    %65 = arith.truncf %64 : vector<8x8x8xf32> to vector<8x8x8xbf16>
    "tpu.trace_start"() <{level = 10 : i32, message = "bqd,bkd->bqk"}> : () -> ()
    %cst_6 = arith.constant dense<0.000000e+00> : vector<8x8x8xf32>
    %66 = tpu.matmul %29, %47, %cst_6 {dimension_numbers = #tpu.dot_dimension_numbers<[2], [2], [1], [1], [0, 0, 0, 1, 1, 1], [0], [0]>} : vector<8x8x8xbf16>, vector<8x8x8xbf16>, vector<8x8x8xf32> -> vector<8x8x8xf32>
    "tpu.trace_stop"() : () -> ()
    %cst_7 = arith.constant 0.353553385 : f32
    %67 = vector.broadcast %cst_7 : f32 to vector<8x8x8xf32>
    %68 = arith.mulf %66, %67 : vector<8x8x8xf32>
    %cst_8 = arith.constant dense<0xFF800000> : vector<8x8xf32>
    %69 = vector.multi_reduction <maximumf>, %68, %cst_8 [2] : vector<8x8x8xf32> to vector<8x8xf32>
    %70 = vector.shape_cast %69 : vector<8x8xf32> to vector<8x8x1xf32>
    %71 = vector.broadcast %70 : vector<8x8x1xf32> to vector<8x8x8xf32>
    %72 = arith.subf %68, %71 : vector<8x8x8xf32>
    %73 = math.exp %72 : vector<8x8x8xf32>
    %cst_9 = arith.constant dense<0.000000e+00> : vector<8x8xf32>
    %74 = vector.multi_reduction <add>, %73, %cst_9 [2] : vector<8x8x8xf32> to vector<8x8xf32>
    %75 = vector.shape_cast %74 : vector<8x8xf32> to vector<8x8x1xf32>
    %76 = tpu.reciprocal %75 {approx = true} : vector<8x8x1xf32> -> vector<8x8x1xf32>
    %77 = vector.broadcast %76 : vector<8x8x1xf32> to vector<8x8x8xf32>
    %78 = arith.mulf %73, %77 : vector<8x8x8xf32>
    %79 = arith.truncf %78 : vector<8x8x8xf32> to vector<8x8x8xbf16>
    "tpu.trace_start"() <{level = 10 : i32, message = "bqk,bkd->bqd"}> : () -> ()
    %cst_10 = arith.constant dense<0.000000e+00> : vector<8x8x8xf32>
    %80 = tpu.matmul %79, %65, %cst_10 {dimension_numbers = #tpu.dot_dimension_numbers<[2], [1], [1], [2], [0, 0, 0, 1, 1, 2], [0], [0]>} : vector<8x8x8xbf16>, vector<8x8x8xbf16>, vector<8x8x8xf32> -> vector<8x8x8xf32>
    "tpu.trace_stop"() : () -> ()
    %81 = vector.extract_strided_slice %80 {offsets = [0, 0, 0], sizes = [1, 8, 8], strides = [1, 1, 1]} : vector<8x8x8xf32> to vector<1x8x8xf32>
    %82 = vector.shape_cast %81 : vector<1x8x8xf32> to vector<8x8xf32>
    %83 = vector.extract_strided_slice %80 {offsets = [1, 0, 0], sizes = [1, 8, 8], strides = [1, 1, 1]} : vector<8x8x8xf32> to vector<1x8x8xf32>
    %84 = vector.shape_cast %83 : vector<1x8x8xf32> to vector<8x8xf32>
    %85 = vector.extract_strided_slice %80 {offsets = [2, 0, 0], sizes = [1, 8, 8], strides = [1, 1, 1]} : vector<8x8x8xf32> to vector<1x8x8xf32>
    %86 = vector.shape_cast %85 : vector<1x8x8xf32> to vector<8x8xf32>
    %87 = vector.extract_strided_slice %80 {offsets = [3, 0, 0], sizes = [1, 8, 8], strides = [1, 1, 1]} : vector<8x8x8xf32> to vector<1x8x8xf32>
    %88 = vector.shape_cast %87 : vector<1x8x8xf32> to vector<8x8xf32>
    %89 = tpu.concatenate %82, %84, %86, %88 in 1 : vector<8x8xf32>, vector<8x8xf32>, vector<8x8xf32>, vector<8x8xf32> -> vector<8x32xf32>
    %90 = vector.extract_strided_slice %80 {offsets = [4, 0, 0], sizes = [1, 8, 8], strides = [1, 1, 1]} : vector<8x8x8xf32> to vector<1x8x8xf32>
    %91 = vector.shape_cast %90 : vector<1x8x8xf32> to vector<8x8xf32>
    %92 = vector.extract_strided_slice %80 {offsets = [5, 0, 0], sizes = [1, 8, 8], strides = [1, 1, 1]} : vector<8x8x8xf32> to vector<1x8x8xf32>
    %93 = vector.shape_cast %92 : vector<1x8x8xf32> to vector<8x8xf32>
    %94 = vector.extract_strided_slice %80 {offsets = [6, 0, 0], sizes = [1, 8, 8], strides = [1, 1, 1]} : vector<8x8x8xf32> to vector<1x8x8xf32>
    %95 = vector.shape_cast %94 : vector<1x8x8xf32> to vector<8x8xf32>
    %96 = vector.extract_strided_slice %80 {offsets = [7, 0, 0], sizes = [1, 8, 8], strides = [1, 1, 1]} : vector<8x8x8xf32> to vector<1x8x8xf32>
    %97 = vector.shape_cast %96 : vector<1x8x8xf32> to vector<8x8xf32>
    %98 = tpu.concatenate %91, %93, %95, %97 in 1 : vector<8x8xf32>, vector<8x8xf32>, vector<8x8xf32>, vector<8x8xf32> -> vector<8x32xf32>
    %99 = tpu.concatenate %89, %98 in 0 : vector<8x32xf32>, vector<8x32xf32> -> vector<16x32xf32>
    %100 = arith.truncf %99 : vector<16x32xf32> to vector<16x32xbf16>
    %c0_11 = arith.constant 0 : index
    %c0_12 = arith.constant 0 : index
    %101 = vector.load %arg4[%c0_11, %c0_12] : memref<32x32xf32, #tpu.memory_space<vmem>>, vector<32x32xf32>
    %102 = arith.truncf %101 : vector<32x32xf32> to vector<32x32xbf16>
    %cst_13 = arith.constant dense<0.000000e+00> : vector<16x32xf32>
    %103 = tpu.matmul %100, %102, %cst_13 {dimension_numbers = #tpu.dot_dimension_numbers<[1], [0], [0], [1], [0, 0, 1, 1], [], []>} : vector<16x32xbf16>, vector<32x32xbf16>, vector<16x32xf32> -> vector<16x32xf32>
    %c0_14 = arith.constant 0 : index
    %c0_15 = arith.constant 0 : index
    %104 = vector.load %arg5[%c0_14, %c0_15] : memref<1x32xf32, #tpu.memory_space<vmem>>, vector<1x32xf32>
    %105 = vector.broadcast %104 : vector<1x32xf32> to vector<16x32xf32>
    %106 = arith.addf %103, %105 : vector<16x32xf32>
    %107 = arith.addf %1, %106 : vector<16x32xf32>
    %c0_16 = arith.constant 0 : index
    %c0_17 = arith.constant 0 : index
    %108 = vector.load %arg6[%c0_16, %c0_17] : memref<1x32xf32, #tpu.memory_space<vmem>>, vector<1x32xf32>
    %c0_18 = arith.constant 0 : index
    %c0_19 = arith.constant 0 : index
    %109 = vector.load %arg7[%c0_18, %c0_19] : memref<1x32xf32, #tpu.memory_space<vmem>>, vector<1x32xf32>
    %cst_20 = arith.constant dense<0.000000e+00> : vector<16xf32>
    %110 = vector.multi_reduction <add>, %107, %cst_20 [1] : vector<16x32xf32> to vector<16xf32>
    %111 = vector.shape_cast %110 : vector<16xf32> to vector<16x1xf32>
    %cst_21 = arith.constant 3.200000e+01 : f32
    %112 = vector.broadcast %cst_21 : f32 to vector<16x1xf32>
    %113 = arith.divf %111, %112 : vector<16x1xf32>
    %114 = vector.broadcast %113 : vector<16x1xf32> to vector<16x32xf32>
    %115 = arith.subf %107, %114 : vector<16x32xf32>
    %116 = arith.mulf %115, %115 : vector<16x32xf32>
    %cst_22 = arith.constant dense<0.000000e+00> : vector<16xf32>
    %117 = vector.multi_reduction <add>, %116, %cst_22 [1] : vector<16x32xf32> to vector<16xf32>
    %118 = vector.shape_cast %117 : vector<16xf32> to vector<16x1xf32>
    %cst_23 = arith.constant 3.200000e+01 : f32
    %119 = vector.broadcast %cst_23 : f32 to vector<16x1xf32>
    %120 = arith.divf %118, %119 : vector<16x1xf32>
    %121 = vector.broadcast %113 : vector<16x1xf32> to vector<16x32xf32>
    %122 = arith.subf %107, %121 : vector<16x32xf32>
    %cst_24 = arith.constant 9.99999974E-6 : f32
    %123 = vector.broadcast %cst_24 : f32 to vector<16x1xf32>
    %124 = arith.addf %120, %123 : vector<16x1xf32>
    %125 = math.rsqrt %124 : vector<16x1xf32>
    %126 = vector.broadcast %125 : vector<16x1xf32> to vector<16x32xf32>
    %127 = arith.mulf %122, %126 : vector<16x32xf32>
    %128 = vector.broadcast %108 : vector<1x32xf32> to vector<16x32xf32>
    %129 = arith.mulf %127, %128 : vector<16x32xf32>
    %130 = vector.broadcast %109 : vector<1x32xf32> to vector<16x32xf32>
    %131 = arith.addf %129, %130 : vector<16x32xf32>
    %132 = arith.truncf %131 : vector<16x32xf32> to vector<16x32xbf16>
    %c0_25 = arith.constant 0 : index
    %c0_26 = arith.constant 0 : index
    %133 = vector.load %arg8[%c0_25, %c0_26] : memref<32x64xf32, #tpu.memory_space<vmem>>, vector<32x64xf32>
    %134 = arith.truncf %133 : vector<32x64xf32> to vector<32x64xbf16>
    %cst_27 = arith.constant dense<0.000000e+00> : vector<16x64xf32>
    %135 = tpu.matmul %132, %134, %cst_27 {dimension_numbers = #tpu.dot_dimension_numbers<[1], [0], [0], [1], [0, 0, 1, 1], [], []>} : vector<16x32xbf16>, vector<32x64xbf16>, vector<16x64xf32> -> vector<16x64xf32>
    %c0_28 = arith.constant 0 : index
    %c0_29 = arith.constant 0 : index
    %136 = vector.load %arg9[%c0_28, %c0_29] : memref<1x64xf32, #tpu.memory_space<vmem>>, vector<1x64xf32>
    %137 = vector.broadcast %136 : vector<1x64xf32> to vector<16x64xf32>
    %138 = arith.addf %135, %137 : vector<16x64xf32>
    %cst_30 = arith.constant 0.000000e+00 : f32
    %139 = vector.broadcast %cst_30 : f32 to vector<16x64xf32>
    %140 = arith.maximumf %138, %139 : vector<16x64xf32>
    %141 = arith.truncf %140 : vector<16x64xf32> to vector<16x64xbf16>
    %c0_31 = arith.constant 0 : index
    %c0_32 = arith.constant 0 : index
    %142 = vector.load %arg10[%c0_31, %c0_32] : memref<64x32xf32, #tpu.memory_space<vmem>>, vector<64x32xf32>
    %143 = arith.truncf %142 : vector<64x32xf32> to vector<64x32xbf16>
    %cst_33 = arith.constant dense<0.000000e+00> : vector<16x32xf32>
    %144 = tpu.matmul %141, %143, %cst_33 {dimension_numbers = #tpu.dot_dimension_numbers<[1], [0], [0], [1], [0, 0, 1, 1], [], []>} : vector<16x64xbf16>, vector<64x32xbf16>, vector<16x32xf32> -> vector<16x32xf32>
    %c0_34 = arith.constant 0 : index
    %c0_35 = arith.constant 0 : index
    %145 = vector.load %arg11[%c0_34, %c0_35] : memref<1x32xf32, #tpu.memory_space<vmem>>, vector<1x32xf32>
    %146 = vector.broadcast %145 : vector<1x32xf32> to vector<16x32xf32>
    %147 = arith.addf %144, %146 : vector<16x32xf32>
    %148 = arith.addf %131, %147 : vector<16x32xf32>
    %c0_36 = arith.constant 0 : index
    %c0_37 = arith.constant 0 : index
    %149 = vector.load %arg6[%c0_36, %c0_37] : memref<1x32xf32, #tpu.memory_space<vmem>>, vector<1x32xf32>
    %c0_38 = arith.constant 0 : index
    %c0_39 = arith.constant 0 : index
    %150 = vector.load %arg7[%c0_38, %c0_39] : memref<1x32xf32, #tpu.memory_space<vmem>>, vector<1x32xf32>
    %cst_40 = arith.constant dense<0.000000e+00> : vector<16xf32>
    %151 = vector.multi_reduction <add>, %148, %cst_40 [1] : vector<16x32xf32> to vector<16xf32>
    %152 = vector.shape_cast %151 : vector<16xf32> to vector<16x1xf32>
    %cst_41 = arith.constant 3.200000e+01 : f32
    %153 = vector.broadcast %cst_41 : f32 to vector<16x1xf32>
    %154 = arith.divf %152, %153 : vector<16x1xf32>
    %155 = vector.broadcast %154 : vector<16x1xf32> to vector<16x32xf32>
    %156 = arith.subf %148, %155 : vector<16x32xf32>
    %157 = arith.mulf %156, %156 : vector<16x32xf32>
    %cst_42 = arith.constant dense<0.000000e+00> : vector<16xf32>
    %158 = vector.multi_reduction <add>, %157, %cst_42 [1] : vector<16x32xf32> to vector<16xf32>
    %159 = vector.shape_cast %158 : vector<16xf32> to vector<16x1xf32>
    %cst_43 = arith.constant 3.200000e+01 : f32
    %160 = vector.broadcast %cst_43 : f32 to vector<16x1xf32>
    %161 = arith.divf %159, %160 : vector<16x1xf32>
    %162 = vector.broadcast %154 : vector<16x1xf32> to vector<16x32xf32>
    %163 = arith.subf %148, %162 : vector<16x32xf32>
    %cst_44 = arith.constant 9.99999974E-6 : f32
    %164 = vector.broadcast %cst_44 : f32 to vector<16x1xf32>
    %165 = arith.addf %161, %164 : vector<16x1xf32>
    %166 = math.rsqrt %165 : vector<16x1xf32>
    %167 = vector.broadcast %166 : vector<16x1xf32> to vector<16x32xf32>
    %168 = arith.mulf %163, %167 : vector<16x32xf32>
    %169 = vector.broadcast %149 : vector<1x32xf32> to vector<16x32xf32>
    %170 = arith.mulf %168, %169 : vector<16x32xf32>
    %171 = vector.broadcast %150 : vector<1x32xf32> to vector<16x32xf32>
    %172 = arith.addf %170, %171 : vector<16x32xf32>
    %173 = vector.shape_cast %172 : vector<16x32xf32> to vector<2x8x32xf32>
    %c0_45 = arith.constant 0 : index
    %c0_46 = arith.constant 0 : index
    %c0_47 = arith.constant 0 : index
    %174 = vector.load %arg12[%c0_45, %c0_46, %c0_47] : memref<2x8x32xf32, #tpu.memory_space<vmem>>, vector<2x8x32xf32>
    tpu.vector_store %arg12[%c0_45, %c0_46, %c0_47], %173 {strides = array<i32>} : memref<2x8x32xf32, #tpu.memory_space<vmem>>, vector<2x8x32xf32>,
    return
  }
  func.func @transform_0(%arg0: i32) -> (i32, i32, i32) {
    %c0_i32 = arith.constant 0 : i32
    %c0_i32_0 = arith.constant 0 : i32
    %c0_i32_1 = arith.constant 0 : i32
    %c0_i32_2 = arith.constant 0 : i32
    return %c0_i32, %c0_i32_0, %c0_i32_1 : i32, i32, i32
  }
  func.func @transform_1(%arg0: i32) -> (i32, i32) {
    %c0_i32 = arith.constant 0 : i32
    %c0_i32_0 = arith.constant 0 : i32
    %c0_i32_1 = arith.constant 0 : i32
    return %c0_i32, %c0_i32_0 : i32, i32
  }
  func.func @transform_2(%arg0: i32) -> (i32, i32) {
    %c0_i32 = arith.constant 0 : i32
    %c0_i32_0 = arith.constant 0 : i32
    %c0_i32_1 = arith.constant 0 : i32
    return %c0_i32, %c0_i32_0 : i32, i32
  }
  func.func @transform_3(%arg0: i32) -> (i32, i32) {
    %c0_i32 = arith.constant 0 : i32
    %c0_i32_0 = arith.constant 0 : i32
    %c0_i32_1 = arith.constant 0 : i32
    return %c0_i32, %c0_i32_0 : i32, i32
  }
  func.func @transform_4(%arg0: i32) -> (i32, i32) {
    %c0_i32 = arith.constant 0 : i32
    %c0_i32_0 = arith.constant 0 : i32
    %c0_i32_1 = arith.constant 0 : i32
    return %c0_i32, %c0_i32_0 : i32, i32
  }
  func.func @transform_5(%arg0: i32) -> (i32, i32) {
    %c0_i32 = arith.constant 0 : i32
    %c0_i32_0 = arith.constant 0 : i32
    %c0_i32_1 = arith.constant 0 : i32
    return %c0_i32, %c0_i32_0 : i32, i32
  }
  func.func @transform_6(%arg0: i32) -> (i32, i32) {
    %c0_i32 = arith.constant 0 : i32
    %c0_i32_0 = arith.constant 0 : i32
    %c0_i32_1 = arith.constant 0 : i32
    return %c0_i32, %c0_i32_0 : i32, i32
  }
  func.func @transform_7(%arg0: i32) -> (i32, i32) {
    %c0_i32 = arith.constant 0 : i32
    %c0_i32_0 = arith.constant 0 : i32
    %c0_i32_1 = arith.constant 0 : i32
    return %c0_i32, %c0_i32_0 : i32, i32
  }
  func.func @transform_8(%arg0: i32) -> (i32, i32) {
    %c0_i32 = arith.constant 0 : i32
    %c0_i32_0 = arith.constant 0 : i32
    %c0_i32_1 = arith.constant 0 : i32
    return %c0_i32, %c0_i32_0 : i32, i32
  }
  func.func @transform_9(%arg0: i32) -> (i32, i32) {
    %c0_i32 = arith.constant 0 : i32
    %c0_i32_0 = arith.constant 0 : i32
    %c0_i32_1 = arith.constant 0 : i32
    return %c0_i32, %c0_i32_0 : i32, i32
  }
  func.func @transform_10(%arg0: i32) -> (i32, i32) {
    %c0_i32 = arith.constant 0 : i32
    %c0_i32_0 = arith.constant 0 : i32
    %c0_i32_1 = arith.constant 0 : i32
    return %c0_i32, %c0_i32_0 : i32, i32
  }
  func.func @transform_11(%arg0: i32) -> (i32, i32, i32) {
    %c0_i32 = arith.constant 0 : i32
    %c0_i32_0 = arith.constant 0 : i32
    %c0_i32_1 = arith.constant 0 : i32
    %c0_i32_2 = arith.constant 0 : i32
    return %c0_i32, %c0_i32_0, %c0_i32_1 : i32, i32, i32
  }
}

</mosaic_0001>

<llo_original>
// kernel: tpu_custom_call.1
$region0: #{tpu_custom_call.1}
  #allocation0 [shape = 'u32[]', space=smem, size = 0x4, offset = 0x4, fixed_abs, tag = 'smem constant byte address 0x4 - core index']
  #allocation1 [shape = 'u32[144,128]{1,0:T(1,128)}', space=vmem, size = 0x12000, scoped, tag = 'internal scratch']
  %s0 = inlined_call_operand.hbm [shape: f32[2,8,32], index: 0, kind: input, shape index: {}]
  %s1 = inlined_call_operand.vmem [shape: f32[32,96], index: 1, kind: input, shape index: {}]
  %s2 = inlined_call_operand.vmem [shape: f32[1,96], index: 2, kind: input, shape index: {}]
  %s3 = inlined_call_operand.vmem [shape: f32[32,32], index: 3, kind: input, shape index: {}]
  %s4 = inlined_call_operand.vmem [shape: f32[1,32], index: 4, kind: input, shape index: {}]
  %s5 = inlined_call_operand.hbm [shape: f32[1,32], index: 5, kind: input, shape index: {}]
  %s6 = inlined_call_operand.hbm [shape: f32[1,32], index: 6, kind: input, shape index: {}]
  %s7 = inlined_call_operand.vmem [shape: f32[32,64], index: 7, kind: input, shape index: {}]
  %s8 = inlined_call_operand.hbm [shape: f32[1,64], index: 8, kind: input, shape index: {}]
  %s9 = inlined_call_operand.vmem [shape: f32[64,32], index: 9, kind: input, shape index: {}]
  %s10 = inlined_call_operand.vmem [shape: f32[1,32], index: 10, kind: input, shape index: {}]
  %s11 = inlined_call_operand.hbm [shape: f32[2,8,32], index: 11, kind: output, shape index: {}]
  %s12 = sld [smem:[#allocation0]]
  $region70: #{tpu_custom_call.1} parent=0
    _
  %s14 = ssub.s32 1, %s12
  %s15 = scalar_select 0, %s14, %s12
  $region1: #{tpu_custom_call.1} parent=0
    #allocation2 [shape = 'u8[8192]{0}', space=vmem, size = 0x2000, scoped, tag = 'input window, operand 0, single buffered']
    #allocation3 [shape = 's32[1]{0}', space=sflag, size = 0x4, scoped, tag = 'scoped memory for tpu_custom_call.1']
    #allocation4 [shape = 's32[1]{0}', space=sflag, size = 0x4, scoped, tag = 'scoped memory for tpu_custom_call.1']
    #allocation5 [shape = 'u8[512]{0}', space=vmem, size = 0x400, scoped, tag = 'input window, operand 5, single buffered']
    #allocation6 [shape = 's32[1]{0}', space=sflag, size = 0x4, scoped, tag = 'scoped memory for tpu_custom_call.1']
    #allocation7 [shape = 'u8[512]{0}', space=vmem, size = 0x400, scoped, tag = 'input window, operand 6, single buffered']
    #allocation8 [shape = 'u8[512]{0}', space=vmem, size = 0x400, scoped, tag = 'input window, operand 8, single buffered']
    #allocation9 [shape = 's32[1]{0}', space=sflag, size = 0x4, scoped, tag = 'scoped memory for tpu_custom_call.1']
    #allocation10 [shape = 'u8[8192]{0}', space=vmem, size = 0x2000, scoped, tag = 'output window, operand 0, single buffered']
    %16 = vsyncpa [#allocation3], 0
    %17 = vsyncpa [#allocation6], 0
    %18 = vsyncpa [#allocation9], 0
    %19 = vsyncpa [#allocation4], 0
    // Predicated region
    $region2: #{tpu_custom_call.1} parent=1 // pred_check
      _
    $region3: #{tpu_custom_call.1} parent=1 // pred_check_branch
      %21 = sbr.rel (0) target = $region5
    $region4: #{tpu_custom_call.1} parent=1 // pred_region
      %s23 = ssub.s32 256, 256
      %24 = vsyncadd [#allocation3], %s23
      %s25 = sshll.u32 [#allocation2], 4
      %s26 = int_to_ptr.vmem [resolvable:$true] %s25
      %31 = dma.hbm_to_vmem [thread:$0]  %s0, 256, %s26, [#allocation3], 128, 128, 8
    $region5: #{tpu_custom_call.1} parent=1 // pred_fallthru
      _
    // Predicated region
    $region6: #{tpu_custom_call.1} parent=1 // pred_check
      _
    $region7: #{tpu_custom_call.1} parent=1 // pred_check_branch
      %33 = sbr.rel (0) target = $region9
    $region8: #{tpu_custom_call.1} parent=1 // pred_region
      _
    $region9: #{tpu_custom_call.1} parent=1 // pred_fallthru
      _
    // Predicated region
    $region10: #{tpu_custom_call.1} parent=1 // pred_check
      _
    $region11: #{tpu_custom_call.1} parent=1 // pred_check_branch
      %35 = sbr.rel (0) target = $region13
    $region12: #{tpu_custom_call.1} parent=1 // pred_region
      _
    $region13: #{tpu_custom_call.1} parent=1 // pred_fallthru
      _
    // Predicated region
    $region14: #{tpu_custom_call.1} parent=1 // pred_check
      _
    $region15: #{tpu_custom_call.1} parent=1 // pred_check_branch
      %37 = sbr.rel (0) target = $region17
    $region16: #{tpu_custom_call.1} parent=1 // pred_region
      _
    $region17: #{tpu_custom_call.1} parent=1 // pred_fallthru
      _
    // Predicated region
    $region18: #{tpu_custom_call.1} parent=1 // pred_check
      _
    $region19: #{tpu_custom_call.1} parent=1 // pred_check_branch
      %39 = sbr.rel (0) target = $region21
    $region20: #{tpu_custom_call.1} parent=1 // pred_region
      _
    $region21: #{tpu_custom_call.1} parent=1 // pred_fallthru
      _
    // Predicated region
    $region22: #{tpu_custom_call.1} parent=1 // pred_check
      _
    $region23: #{tpu_custom_call.1} parent=1 // pred_check_branch
      %41 = sbr.rel (0) target = $region25
    $region24: #{tpu_custom_call.1} parent=1 // pred_region
      %s43 = ssub.s32 16, 16
      %44 = vsyncadd [#allocation6], %s43
      %s46 = sshll.u32 [#allocation5], 4
      %s47 = int_to_ptr.vmem [resolvable:$true] %s46
      %49 = dma.hbm_to_vmem [thread:$0]  %s5, 16, %s47, [#allocation6]
    $region25: #{tpu_custom_call.1} parent=1 // pred_fallthru
      _
    // Predicated region
    $region26: #{tpu_custom_call.1} parent=1 // pred_check
      _
    $region27: #{tpu_custom_call.1} parent=1 // pred_check_branch
      %51 = sbr.rel (0) target = $region29
    $region28: #{tpu_custom_call.1} parent=1 // pred_region
      %s53 = ssub.s32 16, 16
      %54 = vsyncadd [#allocation6], %s53
      %s56 = sshll.u32 [#allocation7], 4
      %s57 = int_to_ptr.vmem [resolvable:$true] %s56
      %59 = dma.hbm_to_vmem [thread:$0]  %s6, 16, %s57, [#allocation6]
    $region29: #{tpu_custom_call.1} parent=1 // pred_fallthru
      _
    // Predicated region
    $region30: #{tpu_custom_call.1} parent=1 // pred_check
      _
    $region31: #{tpu_custom_call.1} parent=1 // pred_check_branch
      %61 = sbr.rel (0) target = $region33
    $region32: #{tpu_custom_call.1} parent=1 // pred_region
      _
    $region33: #{tpu_custom_call.1} parent=1 // pred_fallthru
      _
    // Predicated region
    $region34: #{tpu_custom_call.1} parent=1 // pred_check
      _
    $region35: #{tpu_custom_call.1} parent=1 // pred_check_branch
      %63 = sbr.rel (0) target = $region37
    $region36: #{tpu_custom_call.1} parent=1 // pred_region
      %s65 = ssub.s32 16, 16
      %66 = vsyncadd [#allocation9], %s65
      %s68 = sshll.u32 [#allocation8], 4
      %s69 = int_to_ptr.vmem [resolvable:$true] %s68
      %71 = dma.hbm_to_vmem [thread:$0]  %s8, 16, %s69, [#allocation9]
    $region37: #{tpu_custom_call.1} parent=1 // pred_fallthru
      _
    // Predicated region
    $region38: #{tpu_custom_call.1} parent=1 // pred_check
      _
    $region39: #{tpu_custom_call.1} parent=1 // pred_check_branch
      %73 = sbr.rel (0) target = $region41
    $region40: #{tpu_custom_call.1} parent=1 // pred_region
      _
    $region41: #{tpu_custom_call.1} parent=1 // pred_fallthru
      _
    // Predicated region
    $region42: #{tpu_custom_call.1} parent=1 // pred_check
      _
    $region43: #{tpu_custom_call.1} parent=1 // pred_check_branch
      %75 = sbr.rel (0) target = $region45
    $region44: #{tpu_custom_call.1} parent=1 // pred_region
      _
    $region45: #{tpu_custom_call.1} parent=1 // pred_fallthru
      _
    // Predicated region
    $region46: #{tpu_custom_call.1} parent=1 // pred_check
      _
    $region47: #{tpu_custom_call.1} parent=1 // pred_check_branch
      %77 = sbr.rel (0) target = $region49
    $region48: #{tpu_custom_call.1} parent=1 // pred_region
      %78 = dma.done [#allocation3], 256
    $region49: #{tpu_custom_call.1} parent=1 // pred_fallthru
      _
    // Predicated region
    $region50: #{tpu_custom_call.1} parent=1 // pred_check
      _
    $region51: #{tpu_custom_call.1} parent=1 // pred_check_branch
      %80 = sbr.rel (0) target = $region53
    $region52: #{tpu_custom_call.1} parent=1 // pred_region
      %81 = dma.done [#allocation6], 16
    $region53: #{tpu_custom_call.1} parent=1 // pred_fallthru
      _
    // Predicated region
    $region54: #{tpu_custom_call.1} parent=1 // pred_check
      _
    $region55: #{tpu_custom_call.1} parent=1 // pred_check_branch
      %83 = sbr.rel (0) target = $region57
    $region56: #{tpu_custom_call.1} parent=1 // pred_region
      %84 = dma.done [#allocation6], 16
    $region57: #{tpu_custom_call.1} parent=1 // pred_fallthru
      _
    // Predicated region
    $region58: #{tpu_custom_call.1} parent=1 // pred_check
      _
    $region59: #{tpu_custom_call.1} parent=1 // pred_check_branch
      %86 = sbr.rel (0) target = $region61
    $region60: #{tpu_custom_call.1} parent=1 // pred_region
      %87 = dma.done [#allocation9], 16
    $region61: #{tpu_custom_call.1} parent=1 // pred_fallthru
      _
    %v89 = vld [vmem:[#allocation2] sm:$0xff]
    %v90 = vld [vmem:[#allocation2 + $0x8] sm:$0xff]
    %v91 = vpack.c.bf16 %v90, %v89
    %v92 = vld [vmem:[%s1] sm:$0xff]
    %v93 = vld [vmem:[%s1 + $0x8] sm:$0xff]
    %v94 = vld [vmem:[%s1 + $0x10] sm:$0xff]
    %v95 = vld [vmem:[%s1 + $0x18] sm:$0xff]
    %v96 = vpack.c.bf16 %v93, %v92
    %v97 = vpack.c.bf16 %v95, %v94
    %v98 = vld [vmem:[%s2] sm:$0x1]
    %v100 = vlaneseq
    %v101 = vshrl.u32 %v100, 7
    %v102 = vsub.s32 0, %v101
    %v103 = vrot.slane %v98, %v102
    %vm105 = vcmask 261120
    %v107 = vsel %vm105, %v91, 0
    %109 = vmatprep.subr.bf16.mxu0 0
    %110 = vmatpush1.bf16.msra.mxu0 %v96
    %111 = vmatprep.subr.bf16.mxu0 0
    %112 = vmatpush1.bf16.msra.mxu0 %v97
    %113 = vmatprep.subr.bf16.mxu0 0
    %114 = vmatpush1.bf16.msra.mxu0 0
    %115 = vmatprep.subr.bf16.mxu0 0
    %116 = vmatpush1.bf16.msra.mxu0 0
    %117 = vmatprep.subr.bf16.mxu0 0
    %118 = vmatpush1.bf16.msra.mxu0 0
    %119 = vmatprep.subr.bf16.mxu0 0
    %120 = vmatpush1.bf16.msra.mxu0 0
    %121 = vmatprep.subr.bf16.mxu0 0
    %122 = vmatpush1.bf16.msra.mxu0 0
    %123 = vmatprep.subr.bf16.mxu0 0
    %124 = vmatpush1.bf16.msra.mxu0 0
    %125 = vmatprep.subr.bf16.mxu0 0
    %126 = vmatpush1.bf16.msra.mxu0 0
    %127 = vmatprep.subr.bf16.mxu0 0
    %128 = vmatpush1.bf16.msra.mxu0 0
    %129 = vmatprep.subr.bf16.mxu0 0
    %130 = vmatpush1.bf16.msra.mxu0 0
    %131 = vmatprep.subr.bf16.mxu0 0
    %132 = vmatpush1.bf16.msra.mxu0 0
    %133 = vmatprep.subr.bf16.mxu0 0
    %134 = vmatpush1.bf16.msra.mxu0 0
    %135 = vmatprep.subr.bf16.mxu0 0
    %136 = vmatpush1.bf16.msra.mxu0 0
    %137 = vmatprep.subr.bf16.mxu0 0
    %138 = vmatpush1.bf16.msra.mxu0 0
    %139 = vmatprep.subr.bf16.mxu0 0
    %140 = vmatpush1.bf16.msra.mxu0 0
    %141 = vmatprep.mubr.bf16.mxu0 0
    %142 = vmatmul.mubr.bf16.gmra.mrb[0].mxu0 %v107
    %v143 = vpop.f32.mrb[0].mxu0
    %v144 = vadd.f32 %v103, %v143
    %v145 = vpop.f32.mrb[0].mxu0
    %v146 = vpop.f32.mrb[0].mxu0
    %v147 = vadd.f32 %v103, %v146
    %v148 = vpop.f32.mrb[0].mxu0
    %149 = vdwg.mxu0
    %151 = vrot.lane.b32.xlu0 %v144, 120
    %v152 = vpop.permute.xlu0 %151
    %154 = vrot.lane.b32.xlu0 %v144, 112
    %v155 = vpop.permute.xlu0 %154
    %157 = vrot.lane.b32.xlu0 %v144, 104
    %v158 = vpop.permute.xlu0 %157
    %161 = vrot.lane.b32.xlu0 %v147, 120
    %v162 = vpop.permute.xlu0 %161
    %164 = vrot.lane.b32.xlu0 %v147, 112
    %v165 = vpop.permute.xlu0 %164
    %167 = vrot.lane.b32.xlu0 %v147, 104
    %v168 = vpop.permute.xlu0 %167
    %v170 = vpack.c.bf16 %v144, %v144
    %v171 = vpack.c.bf16 %v152, %v152
    %v172 = vpack.c.bf16 %v155, %v155
    %v173 = vpack.c.bf16 %v158, %v158
    %v174 = vpack.c.bf16 %v147, %v147
    %v175 = vpack.c.bf16 %v162, %v162
    %v176 = vpack.c.bf16 %v165, %v165
    %v177 = vpack.c.bf16 %v168, %v168
    %179 = vrot.lane.b32.xlu0 %v170, 96
    %v180 = vpop.permute.xlu0 %179
    %vm181 = vcmask 64512
    %v183 = vsel %vm181, %v170, 0
    %v186 = vsel %vm181, %v180, 0
    %188 = vmatprep.subr.bf16.mxu0 0
    %189 = vmatpush1.bf16.xpose.msra.mxu0 %v186
    %190 = vmatprep.subr.bf16.mxu0 0
    %191 = vmatpush1.bf16.xpose.msra.mxu0 0
    %192 = vmatprep.subr.bf16.mxu0 0
    %193 = vmatpush1.bf16.xpose.msra.mxu0 0
    %194 = vmatprep.subr.bf16.mxu0 0
    %195 = vmatpush1.bf16.xpose.msra.mxu0 0
    %196 = vmatprep.subr.bf16.mxu0 0
    %197 = vmatpush1.bf16.xpose.msra.mxu0 0
    %198 = vmatprep.subr.bf16.mxu0 0
    %199 = vmatpush1.bf16.xpose.msra.mxu0 0
    %200 = vmatprep.subr.bf16.mxu0 0
    %201 = vmatpush1.bf16.xpose.msra.mxu0 0
    %202 = vmatprep.subr.bf16.mxu0 0
    %203 = vmatpush1.bf16.xpose.msra.mxu0 0
    %204 = vmatprep.subr.bf16.mxu0 0
    %205 = vmatpush1.bf16.xpose.msra.mxu0 0
    %206 = vmatprep.subr.bf16.mxu0 0
    %207 = vmatpush1.bf16.xpose.msra.mxu0 0
    %208 = vmatprep.subr.bf16.mxu0 0
    %209 = vmatpush1.bf16.xpose.msra.mxu0 0
    %210 = vmatprep.subr.bf16.mxu0 0
    %211 = vmatpush1.bf16.xpose.msra.mxu0 0
    %212 = vmatprep.subr.bf16.mxu0 0
    %213 = vmatpush1.bf16.xpose.msra.mxu0 0
    %214 = vmatprep.subr.bf16.mxu0 0
    %215 = vmatpush1.bf16.xpose.msra.mxu0 0
    %216 = vmatprep.subr.bf16.mxu0 0
    %217 = vmatpush1.bf16.xpose.msra.mxu0 0
    %218 = vmatprep.subr.bf16.mxu0 0
    %219 = vmatpush1.bf16.xpose.msra.mxu0 0
    %220 = vmatprep.mubr.bf16.mxu0 0
    %221 = vmatmul.mubr.bf16.gmra.mrb[0].mxu0 %v183
    %v222 = vpop.f32.mrb[0].mxu0
    %v223 = vadd.f32 0.0, %v222
    %v224 = vpop.f32.mrb[0].mxu0
    %v225 = vpop.f32.mrb[0].mxu0
    %v226 = vpop.f32.mrb[0].mxu0
    %227 = vdwg.mxu0
    %229 = vrot.lane.b32.xlu0 %v171, 96
    %v230 = vpop.permute.xlu0 %229
    %v232 = vsel %vm181, %v171, 0
    %v235 = vsel %vm181, %v230, 0
    %237 = vmatprep.subr.bf16.mxu0 0
    %238 = vmatpush1.bf16.xpose.msra.mxu0 %v235
    %239 = vmatprep.subr.bf16.mxu0 0
    %240 = vmatpush1.bf16.xpose.msra.mxu0 0
    %241 = vmatprep.subr.bf16.mxu0 0
    %242 = vmatpush1.bf16.xpose.msra.mxu0 0
    %243 = vmatprep.subr.bf16.mxu0 0
    %244 = vmatpush1.bf16.xpose.msra.mxu0 0
    %245 = vmatprep.subr.bf16.mxu0 0
    %246 = vmatpush1.bf16.xpose.msra.mxu0 0
    %247 = vmatprep.subr.bf16.mxu0 0
    %248 = vmatpush1.bf16.xpose.msra.mxu0 0
    %249 = vmatprep.subr.bf16.mxu0 0
    %250 = vmatpush1.bf16.xpose.msra.mxu0 0
    %251 = vmatprep.subr.bf16.mxu0 0
    %252 = vmatpush1.bf16.xpose.msra.mxu0 0
    %253 = vmatprep.subr.bf16.mxu0 0
    %254 = vmatpush1.bf16.xpose.msra.mxu0 0
    %255 = vmatprep.subr.bf16.mxu0 0
    %256 = vmatpush1.bf16.xpose.msra.mxu0 0
    %257 = vmatprep.subr.bf16.mxu0 0
    %258 = vmatpush1.bf16.xpose.msra.mxu0 0
    %259 = vmatprep.subr.bf16.mxu0 0
    %260 = vmatpush1.bf16.xpose.msra.mxu0 0
    %261 = vmatprep.subr.bf16.mxu0 0
    %262 = vmatpush1.bf16.xpose.msra.mxu0 0
    %263 = vmatprep.subr.bf16.mxu0 0
    %264 = vmatpush1.bf16.xpose.msra.mxu0 0
    %265 = vmatprep.subr.bf16.mxu0 0
    %266 = vmatpush1.bf16.xpose.msra.mxu0 0
    %267 = vmatprep.subr.bf16.mxu0 0
    %268 = vmatpush1.bf16.xpose.msra.mxu0 0
    %269 = vmatprep.mubr.bf16.mxu0 0
    %270 = vmatmul.mubr.bf16.gmra.mrb[0].mxu0 %v232
    %v271 = vpop.f32.mrb[0].mxu0
    %v272 = vadd.f32 0.0, %v271
    %v273 = vpop.f32.mrb[0].mxu0
    %v274 = vpop.f32.mrb[0].mxu0
    %v275 = vpop.f32.mrb[0].mxu0
    %276 = vdwg.mxu0
    %278 = vrot.lane.b32.xlu0 %v172, 96
    %v279 = vpop.permute.xlu0 %278
    %v281 = vsel %vm181, %v172, 0
    %v284 = vsel %vm181, %v279, 0
    %286 = vmatprep.subr.bf16.mxu0 0
    %287 = vmatpush1.bf16.xpose.msra.mxu0 %v284
    %288 = vmatprep.subr.bf16.mxu0 0
    %289 = vmatpush1.bf16.xpose.msra.mxu0 0
    %290 = vmatprep.subr.bf16.mxu0 0
    %291 = vmatpush1.bf16.xpose.msra.mxu0 0
    %292 = vmatprep.subr.bf16.mxu0 0
    %293 = vmatpush1.bf16.xpose.msra.mxu0 0
    %294 = vmatprep.subr.bf16.mxu0 0
    %295 = vmatpush1.bf16.xpose.msra.mxu0 0
    %296 = vmatprep.subr.bf16.mxu0 0
    %297 = vmatpush1.bf16.xpose.msra.mxu0 0
    %298 = vmatprep.subr.bf16.mxu0 0
    %299 = vmatpush1.bf16.xpose.msra.mxu0 0
    %300 = vmatprep.subr.bf16.mxu0 0
    %301 = vmatpush1.bf16.xpose.msra.mxu0 0
    %302 = vmatprep.subr.bf16.mxu0 0
    %303 = vmatpush1.bf16.xpose.msra.mxu0 0
    %304 = vmatprep.subr.bf16.mxu0 0
    %305 = vmatpush1.bf16.xpose.msra.mxu0 0
    %306 = vmatprep.subr.bf16.mxu0 0
    %307 = vmatpush1.bf16.xpose.msra.mxu0 0
    %308 = vmatprep.subr.bf16.mxu0 0
    %309 = vmatpush1.bf16.xpose.msra.mxu0 0
    %310 = vmatprep.subr.bf16.mxu0 0
    %311 = vmatpush1.bf16.xpose.msra.mxu0 0
    %312 = vmatprep.subr.bf16.mxu0 0
    %313 = vmatpush1.bf16.xpose.msra.mxu0 0
    %314 = vmatprep.subr.bf16.mxu0 0
    %315 = vmatpush1.bf16.xpose.msra.mxu0 0
    %316 = vmatprep.subr.bf16.mxu0 0
    %317 = vmatpush1.bf16.xpose.msra.mxu0 0
    %318 = vmatprep.mubr.bf16.mxu0 0
    %319 = vmatmul.mubr.bf16.gmra.mrb[0].mxu0 %v281
    %v320 = vpop.f32.mrb[0].mxu0
    %v321 = vadd.f32 0.0, %v320
    %v322 = vpop.f32.mrb[0].mxu0
    %v323 = vpop.f32.mrb[0].mxu0
    %v324 = vpop.f32.mrb[0].mxu0
    %325 = vdwg.mxu0
    %327 = vrot.lane.b32.xlu0 %v173, 96
    %v328 = vpop.permute.xlu0 %327
    %v330 = vsel %vm181, %v173, 0
    %v333 = vsel %vm181, %v328, 0
    %335 = vmatprep.subr.bf16.mxu0 0
    %336 = vmatpush1.bf16.xpose.msra.mxu0 %v333
    %337 = vmatprep.subr.bf16.mxu0 0
    %338 = vmatpush1.bf16.xpose.msra.mxu0 0
    %339 = vmatprep.subr.bf16.mxu0 0
    %340 = vmatpush1.bf16.xpose.msra.mxu0 0
    %341 = vmatprep.subr.bf16.mxu0 0
    %342 = vmatpush1.bf16.xpose.msra.mxu0 0
    %343 = vmatprep.subr.bf16.mxu0 0
    %344 = vmatpush1.bf16.xpose.msra.mxu0 0
    %345 = vmatprep.subr.bf16.mxu0 0
    %346 = vmatpush1.bf16.xpose.msra.mxu0 0
    %347 = vmatprep.subr.bf16.mxu0 0
    %348 = vmatpush1.bf16.xpose.msra.mxu0 0
    %349 = vmatprep.subr.bf16.mxu0 0
    %350 = vmatpush1.bf16.xpose.msra.mxu0 0
    %351 = vmatprep.subr.bf16.mxu0 0
    %352 = vmatpush1.bf16.xpose.msra.mxu0 0
    %353 = vmatprep.subr.bf16.mxu0 0
    %354 = vmatpush1.bf16.xpose.msra.mxu0 0
    %355 = vmatprep.subr.bf16.mxu0 0
    %356 = vmatpush1.bf16.xpose.msra.mxu0 0
    %357 = vmatprep.subr.bf16.mxu0 0
    %358 = vmatpush1.bf16.xpose.msra.mxu0 0
    %359 = vmatprep.subr.bf16.mxu0 0
    %360 = vmatpush1.bf16.xpose.msra.mxu0 0
    %361 = vmatprep.subr.bf16.mxu0 0
    %362 = vmatpush1.bf16.xpose.msra.mxu0 0
    %363 = vmatprep.subr.bf16.mxu0 0
    %364 = vmatpush1.bf16.xpose.msra.mxu0 0
    %365 = vmatprep.subr.bf16.mxu0 0
    %366 = vmatpush1.bf16.xpose.msra.mxu0 0
    %367 = vmatprep.mubr.bf16.mxu0 0
    %368 = vmatmul.mubr.bf16.gmra.mrb[0].mxu0 %v330
    %v369 = vpop.f32.mrb[0].mxu0
    %v370 = vadd.f32 0.0, %v369
    %v371 = vpop.f32.mrb[0].mxu0
    %v372 = vpop.f32.mrb[0].mxu0
    %v373 = vpop.f32.mrb[0].mxu0
    %374 = vdwg.mxu0
    %376 = vrot.lane.b32.xlu0 %v174, 96
    %v377 = vpop.permute.xlu0 %376
    %v379 = vsel %vm181, %v174, 0
    %v382 = vsel %vm181, %v377, 0
    %384 = vmatprep.subr.bf16.mxu0 0
    %385 = vmatpush1.bf16.xpose.msra.mxu0 %v382
    %386 = vmatprep.subr.bf16.mxu0 0
    %387 = vmatpush1.bf16.xpose.msra.mxu0 0
    %388 = vmatprep.subr.bf16.mxu0 0
    %389 = vmatpush1.bf16.xpose.msra.mxu0 0
    %390 = vmatprep.subr.bf16.mxu0 0
    %391 = vmatpush1.bf16.xpose.msra.mxu0 0
    %392 = vmatprep.subr.bf16.mxu0 0
    %393 = vmatpush1.bf16.xpose.msra.mxu0 0
    %394 = vmatprep.subr.bf16.mxu0 0
    %395 = vmatpush1.bf16.xpose.msra.mxu0 0
    %396 = vmatprep.subr.bf16.mxu0 0
    %397 = vmatpush1.bf16.xpose.msra.mxu0 0
    %398 = vmatprep.subr.bf16.mxu0 0
    %399 = vmatpush1.bf16.xpose.msra.mxu0 0
    %400 = vmatprep.subr.bf16.mxu0 0
    %401 = vmatpush1.bf16.xpose.msra.mxu0 0
    %402 = vmatprep.subr.bf16.mxu0 0
    %403 = vmatpush1.bf16.xpose.msra.mxu0 0
    %404 = vmatprep.subr.bf16.mxu0 0
    %405 = vmatpush1.bf16.xpose.msra.mxu0 0
    %406 = vmatprep.subr.bf16.mxu0 0
    %407 = vmatpush1.bf16.xpose.msra.mxu0 0
    %408 = vmatprep.subr.bf16.mxu0 0
    %409 = vmatpush1.bf16.xpose.msra.mxu0 0
    %410 = vmatprep.subr.bf16.mxu0 0
    %411 = vmatpush1.bf16.xpose.msra.mxu0 0
    %412 = vmatprep.subr.bf16.mxu0 0
    %413 = vmatpush1.bf16.xpose.msra.mxu0 0
    %414 = vmatprep.subr.bf16.mxu0 0
    %415 = vmatpush1.bf16.xpose.msra.mxu0 0
    %416 = vmatprep.mubr.bf16.mxu0 0
    %417 = vmatmul.mubr.bf16.gmra.mrb[0].mxu0 %v379
    %v418 = vpop.f32.mrb[0].mxu0
    %v419 = vadd.f32 0.0, %v418
    %v420 = vpop.f32.mrb[0].mxu0
    %v421 = vpop.f32.mrb[0].mxu0
    %v422 = vpop.f32.mrb[0].mxu0
    %423 = vdwg.mxu0
    %425 = vrot.lane.b32.xlu0 %v175, 96
    %v426 = vpop.permute.xlu0 %425
    %v428 = vsel %vm181, %v175, 0
    %v431 = vsel %vm181, %v426, 0
    %433 = vmatprep.subr.bf16.mxu0 0
    %434 = vmatpush1.bf16.xpose.msra.mxu0 %v431
    %435 = vmatprep.subr.bf16.mxu0 0
    %436 = vmatpush1.bf16.xpose.msra.mxu0 0
    %437 = vmatprep.subr.bf16.mxu0 0
    %438 = vmatpush1.bf16.xpose.msra.mxu0 0
    %439 = vmatprep.subr.bf16.mxu0 0
    %440 = vmatpush1.bf16.xpose.msra.mxu0 0
    %441 = vmatprep.subr.bf16.mxu0 0
    %442 = vmatpush1.bf16.xpose.msra.mxu0 0
    %443 = vmatprep.subr.bf16.mxu0 0
    %444 = vmatpush1.bf16.xpose.msra.mxu0 0
    %445 = vmatprep.subr.bf16.mxu0 0
    %446 = vmatpush1.bf16.xpose.msra.mxu0 0
    %447 = vmatprep.subr.bf16.mxu0 0
    %448 = vmatpush1.bf16.xpose.msra.mxu0 0
    %449 = vmatprep.subr.bf16.mxu0 0
    %450 = vmatpush1.bf16.xpose.msra.mxu0 0
    %451 = vmatprep.subr.bf16.mxu0 0
    %452 = vmatpush1.bf16.xpose.msra.mxu0 0
    %453 = vmatprep.subr.bf16.mxu0 0
    %454 = vmatpush1.bf16.xpose.msra.mxu0 0
    %455 = vmatprep.subr.bf16.mxu0 0
    %456 = vmatpush1.bf16.xpose.msra.mxu0 0
    %457 = vmatprep.subr.bf16.mxu0 0
    %458 = vmatpush1.bf16.xpose.msra.mxu0 0
    %459 = vmatprep.subr.bf16.mxu0 0
    %460 = vmatpush1.bf16.xpose.msra.mxu0 0
    %461 = vmatprep.subr.bf16.mxu0 0
    %462 = vmatpush1.bf16.xpose.msra.mxu0 0
    %463 = vmatprep.subr.bf16.mxu0 0
    %464 = vmatpush1.bf16.xpose.msra.mxu0 0
    %465 = vmatprep.mubr.bf16.mxu0 0
    %466 = vmatmul.mubr.bf16.gmra.mrb[0].mxu0 %v428
    %v467 = vpop.f32.mrb[0].mxu0
    %v468 = vadd.f32 0.0, %v467
    %v469 = vpop.f32.mrb[0].mxu0
    %v470 = vpop.f32.mrb[0].mxu0
    %v471 = vpop.f32.mrb[0].mxu0
    %472 = vdwg.mxu0
    %474 = vrot.lane.b32.xlu0 %v176, 96
    %v475 = vpop.permute.xlu0 %474
    %v477 = vsel %vm181, %v176, 0
    %v480 = vsel %vm181, %v475, 0
    %482 = vmatprep.subr.bf16.mxu0 0
    %483 = vmatpush1.bf16.xpose.msra.mxu0 %v480
    %484 = vmatprep.subr.bf16.mxu0 0
    %485 = vmatpush1.bf16.xpose.msra.mxu0 0
    %486 = vmatprep.subr.bf16.mxu0 0
    %487 = vmatpush1.bf16.xpose.msra.mxu0 0
    %488 = vmatprep.subr.bf16.mxu0 0
    %489 = vmatpush1.bf16.xpose.msra.mxu0 0
    %490 = vmatprep.subr.bf16.mxu0 0
    %491 = vmatpush1.bf16.xpose.msra.mxu0 0
    %492 = vmatprep.subr.bf16.mxu0 0
    %493 = vmatpush1.bf16.xpose.msra.mxu0 0
    %494 = vmatprep.subr.bf16.mxu0 0
    %495 = vmatpush1.bf16.xpose.msra.mxu0 0
    %496 = vmatprep.subr.bf16.mxu0 0
    %497 = vmatpush1.bf16.xpose.msra.mxu0 0
    %498 = vmatprep.subr.bf16.mxu0 0
    %499 = vmatpush1.bf16.xpose.msra.mxu0 0
    %500 = vmatprep.subr.bf16.mxu0 0
    %501 = vmatpush1.bf16.xpose.msra.mxu0 0
    %502 = vmatprep.subr.bf16.mxu0 0
    %503 = vmatpush1.bf16.xpose.msra.mxu0 0
    %504 = vmatprep.subr.bf16.mxu0 0
    %505 = vmatpush1.bf16.xpose.msra.mxu0 0
    %506 = vmatprep.subr.bf16.mxu0 0
    %507 = vmatpush1.bf16.xpose.msra.mxu0 0
    %508 = vmatprep.subr.bf16.mxu0 0
    %509 = vmatpush1.bf16.xpose.msra.mxu0 0
    %510 = vmatprep.subr.bf16.mxu0 0
    %511 = vmatpush1.bf16.xpose.msra.mxu0 0
    %512 = vmatprep.subr.bf16.mxu0 0
    %513 = vmatpush1.bf16.xpose.msra.mxu0 0
    %514 = vmatprep.mubr.bf16.mxu0 0
    %515 = vmatmul.mubr.bf16.gmra.mrb[0].mxu0 %v477
    %v516 = vpop.f32.mrb[0].mxu0
    %v517 = vadd.f32 0.0, %v516
    %v518 = vpop.f32.mrb[0].mxu0
    %v519 = vpop.f32.mrb[0].mxu0
    %v520 = vpop.f32.mrb[0].mxu0
    %521 = vdwg.mxu0
    %523 = vrot.lane.b32.xlu0 %v177, 96
    %v524 = vpop.permute.xlu0 %523
    %v526 = vsel %vm181, %v177, 0
    %v529 = vsel %vm181, %v524, 0
    %531 = vmatprep.subr.bf16.mxu0 0
    %532 = vmatpush1.bf16.xpose.msra.mxu0 %v529
    %533 = vmatprep.subr.bf16.mxu0 0
    %534 = vmatpush1.bf16.xpose.msra.mxu0 0
    %535 = vmatprep.subr.bf16.mxu0 0
    %536 = vmatpush1.bf16.xpose.msra.mxu0 0
    %537 = vmatprep.subr.bf16.mxu0 0
    %538 = vmatpush1.bf16.xpose.msra.mxu0 0
    %539 = vmatprep.subr.bf16.mxu0 0
    %540 = vmatpush1.bf16.xpose.msra.mxu0 0
    %541 = vmatprep.subr.bf16.mxu0 0
    %542 = vmatpush1.bf16.xpose.msra.mxu0 0
    %543 = vmatprep.subr.bf16.mxu0 0
    %544 = vmatpush1.bf16.xpose.msra.mxu0 0
    %545 = vmatprep.subr.bf16.mxu0 0
    %546 = vmatpush1.bf16.xpose.msra.mxu0 0
    %547 = vmatprep.subr.bf16.mxu0 0
    %548 = vmatpush1.bf16.xpose.msra.mxu0 0
    %549 = vmatprep.subr.bf16.mxu0 0
    %550 = vmatpush1.bf16.xpose.msra.mxu0 0
    %551 = vmatprep.subr.bf16.mxu0 0
    %552 = vmatpush1.bf16.xpose.msra.mxu0 0
    %553 = vmatprep.subr.bf16.mxu0 0
    %554 = vmatpush1.bf16.xpose.msra.mxu0 0
    %555 = vmatprep.subr.bf16.mxu0 0
    %556 = vmatpush1.bf16.xpose.msra.mxu0 0
    %557 = vmatprep.subr.bf16.mxu0 0
    %558 = vmatpush1.bf16.xpose.msra.mxu0 0
    %559 = vmatprep.subr.bf16.mxu0 0
    %560 = vmatpush1.bf16.xpose.msra.mxu0 0
    %561 = vmatprep.subr.bf16.mxu0 0
    %562 = vmatpush1.bf16.xpose.msra.mxu0 0
    %563 = vmatprep.mubr.bf16.mxu0 0
    %564 = vmatmul.mubr.bf16.gmra.mrb[0].mxu0 %v526
    %v565 = vpop.f32.mrb[0].mxu0
    %v566 = vadd.f32 0.0, %v565
    %v567 = vpop.f32.mrb[0].mxu0
    %v568 = vpop.f32.mrb[0].mxu0
    %v569 = vpop.f32.mrb[0].mxu0
    %570 = vdwg.mxu0
    %v571 = vmul.f32 %v223, 0.35355338
    %v572 = vmul.f32 %v272, 0.35355338
    %v573 = vmul.f32 %v321, 0.35355338
    %v574 = vmul.f32 %v370, 0.35355338
    %v575 = vmul.f32 %v419, 0.35355338
    %v576 = vmul.f32 %v468, 0.35355338
    %v577 = vmul.f32 %v517, 0.35355338
    %v578 = vmul.f32 %v566, 0.35355338
    %v579 = vsel %vm181, %v571, -inf
    %580 = vmax.xlane.f32.xlu0 %v579
    %v581 = vpop.xlane.xlu0 %580
    %v582 = vsel %vm181, %v572, -inf
    %583 = vmax.xlane.f32.xlu0 %v582
    %v584 = vpop.xlane.xlu0 %583
    %v585 = vsel %vm181, %v573, -inf
    %586 = vmax.xlane.f32.xlu0 %v585
    %v587 = vpop.xlane.xlu0 %586
    %v588 = vsel %vm181, %v574, -inf
    %589 = vmax.xlane.f32.xlu0 %v588
    %v590 = vpop.xlane.xlu0 %589
    %v591 = vsel %vm181, %v575, -inf
    %592 = vmax.xlane.f32.xlu0 %v591
    %v593 = vpop.xlane.xlu0 %592
    %v594 = vsel %vm181, %v576, -inf
    %595 = vmax.xlane.f32.xlu0 %v594
    %v596 = vpop.xlane.xlu0 %595
    %v597 = vsel %vm181, %v577, -inf
    %598 = vmax.xlane.f32.xlu0 %v597
    %v599 = vpop.xlane.xlu0 %598
    %v600 = vsel %vm181, %v578, -inf
    %601 = vmax.xlane.f32.xlu0 %v600
    %v602 = vpop.xlane.xlu0 %601
    %v603 = vsub.f32 %v571, %v581
    %v604 = vsub.f32 %v572, %v584
    %v605 = vsub.f32 %v573, %v587
    %v606 = vsub.f32 %v574, %v590
    %v607 = vsub.f32 %v575, %v593
    %v608 = vsub.f32 %v576, %v596
    %v609 = vsub.f32 %v577, %v599
    %v610 = vsub.f32 %v578, %v602
    %v611 = vmul.f32 %v603, 1.442695
    %v612 = vpow.pop %v611
    %v613 = vmul.f32 %v604, 1.442695
    %v614 = vpow.pop %v613
    %v615 = vmul.f32 %v605, 1.442695
    %v616 = vpow.pop %v615
    %v617 = vmul.f32 %v606, 1.442695
    %v618 = vpow.pop %v617
    %v619 = vmul.f32 %v607, 1.442695
    %v620 = vpow.pop %v619
    %v621 = vmul.f32 %v608, 1.442695
    %v622 = vpow.pop %v621
    %v623 = vmul.f32 %v609, 1.442695
    %v624 = vpow.pop %v623
    %v625 = vmul.f32 %v610, 1.442695
    %v626 = vpow.pop %v625
    %v627 = vsel %vm181, %v612, 0.0
    %628 = vadd.xlane.f32.xlu0 %v627
    %v629 = vpop.xlane.xlu0 %628
    %v630 = vsel %vm181, %v614, 0.0
    %631 = vadd.xlane.f32.xlu0 %v630
    %v632 = vpop.xlane.xlu0 %631
    %v633 = vsel %vm181, %v616, 0.0
    %634 = vadd.xlane.f32.xlu0 %v633
    %v635 = vpop.xlane.xlu0 %634
    %v636 = vsel %vm181, %v618, 0.0
    %637 = vadd.xlane.f32.xlu0 %v636
    %v638 = vpop.xlane.xlu0 %637
    %v639 = vsel %vm181, %v620, 0.0
    %640 = vadd.xlane.f32.xlu0 %v639
    %v641 = vpop.xlane.xlu0 %640
    %v642 = vsel %vm181, %v622, 0.0
    %643 = vadd.xlane.f32.xlu0 %v642
    %v644 = vpop.xlane.xlu0 %643
    %v645 = vsel %vm181, %v624, 0.0
    %646 = vadd.xlane.f32.xlu0 %v645
    %v647 = vpop.xlane.xlu0 %646
    %v648 = vsel %vm181, %v626, 0.0
    %649 = vadd.xlane.f32.xlu0 %v648
    %v650 = vpop.xlane.xlu0 %649
    %v651 = vrcp.pop %v629
    %v652 = vrcp.pop %v632
    %v653 = vrcp.pop %v635
    %v654 = vrcp.pop %v638
    %v655 = vrcp.pop %v641
    %v656 = vrcp.pop %v644
    %v657 = vrcp.pop %v647
    %v658 = vrcp.pop %v650
    %v659 = vmul.f32 %v612, %v651
    %v660 = vmul.f32 %v614, %v652
    %v661 = vmul.f32 %v616, %v653
    %v662 = vmul.f32 %v618, %v654
    %v663 = vmul.f32 %v620, %v655
    %v664 = vmul.f32 %v622, %v656
    %v665 = vmul.f32 %v624, %v657
    %v666 = vmul.f32 %v626, %v658
    %v667 = vpack.c.bf16 %v659, %v659
    %v668 = vpack.c.bf16 %v660, %v660
    %v669 = vpack.c.bf16 %v661, %v661
    %v670 = vpack.c.bf16 %v662, %v662
    %v671 = vpack.c.bf16 %v663, %v663
    %v672 = vpack.c.bf16 %v664, %v664
    %v673 = vpack.c.bf16 %v665, %v665
    %v674 = vpack.c.bf16 %v666, %v666
    %675 = vrot.lane.b32.xlu0 %v170, 64
    %v676 = vpop.permute.xlu0 %675
    %v678 = vsel %vm181, %v667, 0
    %vm680 = vcmask 1043456
    %v682 = vsel %vm680, %v676, 0
    %684 = vmatprep.subr.bf16.mxu0 0
    %685 = vmatpush1.bf16.msra.mxu0 %v682
    %686 = vmatprep.subr.bf16.mxu0 0
    %687 = vmatpush1.bf16.msra.mxu0 0
    %688 = vmatprep.subr.bf16.mxu0 0
    %689 = vmatpush1.bf16.msra.mxu0 0
    %690 = vmatprep.subr.bf16.mxu0 0
    %691 = vmatpush1.bf16.msra.mxu0 0
    %692 = vmatprep.subr.bf16.mxu0 0
    %693 = vmatpush1.bf16.msra.mxu0 0
    %694 = vmatprep.subr.bf16.mxu0 0
    %695 = vmatpush1.bf16.msra.mxu0 0
    %696 = vmatprep.subr.bf16.mxu0 0
    %697 = vmatpush1.bf16.msra.mxu0 0
    %698 = vmatprep.subr.bf16.mxu0 0
    %699 = vmatpush1.bf16.msra.mxu0 0
    %700 = vmatprep.subr.bf16.mxu0 0
    %701 = vmatpush1.bf16.msra.mxu0 0
    %702 = vmatprep.subr.bf16.mxu0 0
    %703 = vmatpush1.bf16.msra.mxu0 0
    %704 = vmatprep.subr.bf16.mxu0 0
    %705 = vmatpush1.bf16.msra.mxu0 0
    %706 = vmatprep.subr.bf16.mxu0 0
    %707 = vmatpush1.bf16.msra.mxu0 0
    %708 = vmatprep.subr.bf16.mxu0 0
    %709 = vmatpush1.bf16.msra.mxu0 0
    %710 = vmatprep.subr.bf16.mxu0 0
    %711 = vmatpush1.bf16.msra.mxu0 0
    %712 = vmatprep.subr.bf16.mxu0 0
    %713 = vmatpush1.bf16.msra.mxu0 0
    %714 = vmatprep.subr.bf16.mxu0 0
    %715 = vmatpush1.bf16.msra.mxu0 0
    %716 = vmatprep.mubr.bf16.mxu0 0
    %717 = vmatmul.mubr.bf16.gmra.mrb[0].mxu0 %v678
    %v718 = vpop.f32.mrb[0].mxu0
    %v719 = vadd.f32 0.0, %v718
    %v720 = vpop.f32.mrb[0].mxu0
    %v721 = vpop.f32.mrb[0].mxu0
    %v722 = vpop.f32.mrb[0].mxu0
    %723 = vdwg.mxu0
    %724 = vrot.lane.b32.xlu0 %v171, 64
    %v725 = vpop.permute.xlu0 %724
    %v727 = vsel %vm181, %v668, 0
    %v730 = vsel %vm680, %v725, 0
    %732 = vmatprep.subr.bf16.mxu0 0
    %733 = vmatpush1.bf16.msra.mxu0 %v730
    %734 = vmatprep.subr.bf16.mxu0 0
    %735 = vmatpush1.bf16.msra.mxu0 0
    %736 = vmatprep.subr.bf16.mxu0 0
    %737 = vmatpush1.bf16.msra.mxu0 0
    %738 = vmatprep.subr.bf16.mxu0 0
    %739 = vmatpush1.bf16.msra.mxu0 0
    %740 = vmatprep.subr.bf16.mxu0 0
    %741 = vmatpush1.bf16.msra.mxu0 0
    %742 = vmatprep.subr.bf16.mxu0 0
    %743 = vmatpush1.bf16.msra.mxu0 0
    %744 = vmatprep.subr.bf16.mxu0 0
    %745 = vmatpush1.bf16.msra.mxu0 0
    %746 = vmatprep.subr.bf16.mxu0 0
    %747 = vmatpush1.bf16.msra.mxu0 0
    %748 = vmatprep.subr.bf16.mxu0 0
    %749 = vmatpush1.bf16.msra.mxu0 0
    %750 = vmatprep.subr.bf16.mxu0 0
    %751 = vmatpush1.bf16.msra.mxu0 0
    %752 = vmatprep.subr.bf16.mxu0 0
    %753 = vmatpush1.bf16.msra.mxu0 0
    %754 = vmatprep.subr.bf16.mxu0 0
    %755 = vmatpush1.bf16.msra.mxu0 0
    %756 = vmatprep.subr.bf16.mxu0 0
    %757 = vmatpush1.bf16.msra.mxu0 0
    %758 = vmatprep.subr.bf16.mxu0 0
    %759 = vmatpush1.bf16.msra.mxu0 0
    %760 = vmatprep.subr.bf16.mxu0 0
    %761 = vmatpush1.bf16.msra.mxu0 0
    %762 = vmatprep.subr.bf16.mxu0 0
    %763 = vmatpush1.bf16.msra.mxu0 0
    %764 = vmatprep.mubr.bf16.mxu0 0
    %765 = vmatmul.mubr.bf16.gmra.mrb[0].mxu0 %v727
    %v766 = vpop.f32.mrb[0].mxu0
    %v767 = vadd.f32 0.0, %v766
    %v768 = vpop.f32.mrb[0].mxu0
    %v769 = vpop.f32.mrb[0].mxu0
    %v770 = vpop.f32.mrb[0].mxu0
    %771 = vdwg.mxu0
    %772 = vrot.lane.b32.xlu0 %v172, 64
    %v773 = vpop.permute.xlu0 %772
    %v775 = vsel %vm181, %v669, 0
    %v778 = vsel %vm680, %v773, 0
    %780 = vmatprep.subr.bf16.mxu0 0
    %781 = vmatpush1.bf16.msra.mxu0 %v778
    %782 = vmatprep.subr.bf16.mxu0 0
    %783 = vmatpush1.bf16.msra.mxu0 0
    %784 = vmatprep.subr.bf16.mxu0 0
    %785 = vmatpush1.bf16.msra.mxu0 0
    %786 = vmatprep.subr.bf16.mxu0 0
    %787 = vmatpush1.bf16.msra.mxu0 0
    %788 = vmatprep.subr.bf16.mxu0 0
    %789 = vmatpush1.bf16.msra.mxu0 0
    %790 = vmatprep.subr.bf16.mxu0 0
    %791 = vmatpush1.bf16.msra.mxu0 0
    %792 = vmatprep.subr.bf16.mxu0 0
    %793 = vmatpush1.bf16.msra.mxu0 0
    %794 = vmatprep.subr.bf16.mxu0 0
    %795 = vmatpush1.bf16.msra.mxu0 0
    %796 = vmatprep.subr.bf16.mxu0 0
    %797 = vmatpush1.bf16.msra.mxu0 0
    %798 = vmatprep.subr.bf16.mxu0 0
    %799 = vmatpush1.bf16.msra.mxu0 0
    %800 = vmatprep.subr.bf16.mxu0 0
    %801 = vmatpush1.bf16.msra.mxu0 0
    %802 = vmatprep.subr.bf16.mxu0 0
    %803 = vmatpush1.bf16.msra.mxu0 0
    %804 = vmatprep.subr.bf16.mxu0 0
    %805 = vmatpush1.bf16.msra.mxu0 0
    %806 = vmatprep.subr.bf16.mxu0 0
    %807 = vmatpush1.bf16.msra.mxu0 0
    %808 = vmatprep.subr.bf16.mxu0 0
    %809 = vmatpush1.bf16.msra.mxu0 0
    %810 = vmatprep.subr.bf16.mxu0 0
    %811 = vmatpush1.bf16.msra.mxu0 0
    %812 = vmatprep.mubr.bf16.mxu0 0
    %813 = vmatmul.mubr.bf16.gmra.mrb[0].mxu0 %v775
    %v814 = vpop.f32.mrb[0].mxu0
    %v815 = vadd.f32 0.0, %v814
    %v816 = vpop.f32.mrb[0].mxu0
    %v817 = vpop.f32.mrb[0].mxu0
    %v818 = vpop.f32.mrb[0].mxu0
    %819 = vdwg.mxu0
    %820 = vrot.lane.b32.xlu0 %v173, 64
    %v821 = vpop.permute.xlu0 %820
    %v823 = vsel %vm181, %v670, 0
    %v826 = vsel %vm680, %v821, 0
    %828 = vmatprep.subr.bf16.mxu0 0
    %829 = vmatpush1.bf16.msra.mxu0 %v826
    %830 = vmatprep.subr.bf16.mxu0 0
    %831 = vmatpush1.bf16.msra.mxu0 0
    %832 = vmatprep.subr.bf16.mxu0 0
    %833 = vmatpush1.bf16.msra.mxu0 0
    %834 = vmatprep.subr.bf16.mxu0 0
    %835 = vmatpush1.bf16.msra.mxu0 0
    %836 = vmatprep.subr.bf16.mxu0 0
    %837 = vmatpush1.bf16.msra.mxu0 0
    %838 = vmatprep.subr.bf16.mxu0 0
    %839 = vmatpush1.bf16.msra.mxu0 0
    %840 = vmatprep.subr.bf16.mxu0 0
    %841 = vmatpush1.bf16.msra.mxu0 0
    %842 = vmatprep.subr.bf16.mxu0 0
    %843 = vmatpush1.bf16.msra.mxu0 0
    %844 = vmatprep.subr.bf16.mxu0 0
    %845 = vmatpush1.bf16.msra.mxu0 0
    %846 = vmatprep.subr.bf16.mxu0 0
    %847 = vmatpush1.bf16.msra.mxu0 0
    %848 = vmatprep.subr.bf16.mxu0 0
    %849 = vmatpush1.bf16.msra.mxu0 0
    %850 = vmatprep.subr.bf16.mxu0 0
    %851 = vmatpush1.bf16.msra.mxu0 0
    %852 = vmatprep.subr.bf16.mxu0 0
    %853 = vmatpush1.bf16.msra.mxu0 0
    %854 = vmatprep.subr.bf16.mxu0 0
    %855 = vmatpush1.bf16.msra.mxu0 0
    %856 = vmatprep.subr.bf16.mxu0 0
    %857 = vmatpush1.bf16.msra.mxu0 0
    %858 = vmatprep.subr.bf16.mxu0 0
    %859 = vmatpush1.bf16.msra.mxu0 0
    %860 = vmatprep.mubr.bf16.mxu0 0
    %861 = vmatmul.mubr.bf16.gmra.mrb[0].mxu0 %v823
    %v862 = vpop.f32.mrb[0].mxu0
    %v863 = vadd.f32 0.0, %v862
    %v864 = vpop.f32.mrb[0].mxu0
    %v865 = vpop.f32.mrb[0].mxu0
    %v866 = vpop.f32.mrb[0].mxu0
    %867 = vdwg.mxu0
    %868 = vrot.lane.b32.xlu0 %v174, 64
    %v869 = vpop.permute.xlu0 %868
    %v871 = vsel %vm181, %v671, 0
    %v874 = vsel %vm680, %v869, 0
    %876 = vmatprep.subr.bf16.mxu0 0
    %877 = vmatpush1.bf16.msra.mxu0 %v874
    %878 = vmatprep.subr.bf16.mxu0 0
    %879 = vmatpush1.bf16.msra.mxu0 0
    %880 = vmatprep.subr.bf16.mxu0 0
    %881 = vmatpush1.bf16.msra.mxu0 0
    %882 = vmatprep.subr.bf16.mxu0 0
    %883 = vmatpush1.bf16.msra.mxu0 0
    %884 = vmatprep.subr.bf16.mxu0 0
    %885 = vmatpush1.bf16.msra.mxu0 0
    %886 = vmatprep.subr.bf16.mxu0 0
    %887 = vmatpush1.bf16.msra.mxu0 0
    %888 = vmatprep.subr.bf16.mxu0 0
    %889 = vmatpush1.bf16.msra.mxu0 0
    %890 = vmatprep.subr.bf16.mxu0 0
    %891 = vmatpush1.bf16.msra.mxu0 0
    %892 = vmatprep.subr.bf16.mxu0 0
    %893 = vmatpush1.bf16.msra.mxu0 0
    %894 = vmatprep.subr.bf16.mxu0 0
    %895 = vmatpush1.bf16.msra.mxu0 0
    %896 = vmatprep.subr.bf16.mxu0 0
    %897 = vmatpush1.bf16.msra.mxu0 0
    %898 = vmatprep.subr.bf16.mxu0 0
    %899 = vmatpush1.bf16.msra.mxu0 0
    %900 = vmatprep.subr.bf16.mxu0 0
    %901 = vmatpush1.bf16.msra.mxu0 0
    %902 = vmatprep.subr.bf16.mxu0 0
    %903 = vmatpush1.bf16.msra.mxu0 0
    %904 = vmatprep.subr.bf16.mxu0 0
    %905 = vmatpush1.bf16.msra.mxu0 0
    %906 = vmatprep.subr.bf16.mxu0 0
    %907 = vmatpush1.bf16.msra.mxu0 0
    %908 = vmatprep.mubr.bf16.mxu0 0
    %909 = vmatmul.mubr.bf16.gmra.mrb[0].mxu0 %v871
    %v910 = vpop.f32.mrb[0].mxu0
    %v911 = vadd.f32 0.0, %v910
    %v912 = vpop.f32.mrb[0].mxu0
    %v913 = vpop.f32.mrb[0].mxu0
    %v914 = vpop.f32.mrb[0].mxu0
    %915 = vdwg.mxu0
    %916 = vrot.lane.b32.xlu0 %v175, 64
    %v917 = vpop.permute.xlu0 %916
    %v919 = vsel %vm181, %v672, 0
    %v922 = vsel %vm680, %v917, 0
    %924 = vmatprep.subr.bf16.mxu0 0
    %925 = vmatpush1.bf16.msra.mxu0 %v922
    %926 = vmatprep.subr.bf16.mxu0 0
    %927 = vmatpush1.bf16.msra.mxu0 0
    %928 = vmatprep.subr.bf16.mxu0 0
    %929 = vmatpush1.bf16.msra.mxu0 0
    %930 = vmatprep.subr.bf16.mxu0 0
    %931 = vmatpush1.bf16.msra.mxu0 0
    %932 = vmatprep.subr.bf16.mxu0 0
    %933 = vmatpush1.bf16.msra.mxu0 0
    %934 = vmatprep.subr.bf16.mxu0 0
    %935 = vmatpush1.bf16.msra.mxu0 0
    %936 = vmatprep.subr.bf16.mxu0 0
    %937 = vmatpush1.bf16.msra.mxu0 0
    %938 = vmatprep.subr.bf16.mxu0 0
    %939 = vmatpush1.bf16.msra.mxu0 0
    %940 = vmatprep.subr.bf16.mxu0 0
    %941 = vmatpush1.bf16.msra.mxu0 0
    %942 = vmatprep.subr.bf16.mxu0 0
    %943 = vmatpush1.bf16.msra.mxu0 0
    %944 = vmatprep.subr.bf16.mxu0 0
    %945 = vmatpush1.bf16.msra.mxu0 0
    %946 = vmatprep.subr.bf16.mxu0 0
    %947 = vmatpush1.bf16.msra.mxu0 0
    %948 = vmatprep.subr.bf16.mxu0 0
    %949 = vmatpush1.bf16.msra.mxu0 0
    %950 = vmatprep.subr.bf16.mxu0 0
    %951 = vmatpush1.bf16.msra.mxu0 0
    %952 = vmatprep.subr.bf16.mxu0 0
    %953 = vmatpush1.bf16.msra.mxu0 0
    %954 = vmatprep.subr.bf16.mxu0 0
    %955 = vmatpush1.bf16.msra.mxu0 0
    %956 = vmatprep.mubr.bf16.mxu0 0
    %957 = vmatmul.mubr.bf16.gmra.mrb[0].mxu0 %v919
    %v958 = vpop.f32.mrb[0].mxu0
    %v959 = vadd.f32 0.0, %v958
    %v960 = vpop.f32.mrb[0].mxu0
    %v961 = vpop.f32.mrb[0].mxu0
    %v962 = vpop.f32.mrb[0].mxu0
    %963 = vdwg.mxu0
    %964 = vrot.lane.b32.xlu0 %v176, 64
    %v965 = vpop.permute.xlu0 %964
    %v967 = vsel %vm181, %v673, 0
    %v970 = vsel %vm680, %v965, 0
    %972 = vmatprep.subr.bf16.mxu0 0
    %973 = vmatpush1.bf16.msra.mxu0 %v970
    %974 = vmatprep.subr.bf16.mxu0 0
    %975 = vmatpush1.bf16.msra.mxu0 0
    %976 = vmatprep.subr.bf16.mxu0 0
    %977 = vmatpush1.bf16.msra.mxu0 0
    %978 = vmatprep.subr.bf16.mxu0 0
    %979 = vmatpush1.bf16.msra.mxu0 0
    %980 = vmatprep.subr.bf16.mxu0 0
    %981 = vmatpush1.bf16.msra.mxu0 0
    %982 = vmatprep.subr.bf16.mxu0 0
    %983 = vmatpush1.bf16.msra.mxu0 0
    %984 = vmatprep.subr.bf16.mxu0 0
    %985 = vmatpush1.bf16.msra.mxu0 0
    %986 = vmatprep.subr.bf16.mxu0 0
    %987 = vmatpush1.bf16.msra.mxu0 0
    %988 = vmatprep.subr.bf16.mxu0 0
    %989 = vmatpush1.bf16.msra.mxu0 0
    %990 = vmatprep.subr.bf16.mxu0 0
    %991 = vmatpush1.bf16.msra.mxu0 0
    %992 = vmatprep.subr.bf16.mxu0 0
    %993 = vmatpush1.bf16.msra.mxu0 0
    %994 = vmatprep.subr.bf16.mxu0 0
    %995 = vmatpush1.bf16.msra.mxu0 0
    %996 = vmatprep.subr.bf16.mxu0 0
    %997 = vmatpush1.bf16.msra.mxu0 0
    %998 = vmatprep.subr.bf16.mxu0 0
    %999 = vmatpush1.bf16.msra.mxu0 0
    %1000 = vmatprep.subr.bf16.mxu0 0
    %1001 = vmatpush1.bf16.msra.mxu0 0
    %1002 = vmatprep.subr.bf16.mxu0 0
    %1003 = vmatpush1.bf16.msra.mxu0 0
    %1004 = vmatprep.mubr.bf16.mxu0 0
    %1005 = vmatmul.mubr.bf16.gmra.mrb[0].mxu0 %v967
    %v1006 = vpop.f32.mrb[0].mxu0
    %v1007 = vadd.f32 0.0, %v1006
    %v1008 = vpop.f32.mrb[0].mxu0
    %v1009 = vpop.f32.mrb[0].mxu0
    %v1010 = vpop.f32.mrb[0].mxu0
    %1011 = vdwg.mxu0
    %1012 = vrot.lane.b32.xlu0 %v177, 64
    %v1013 = vpop.permute.xlu0 %1012
    %v1015 = vsel %vm181, %v674, 0
    %v1018 = vsel %vm680, %v1013, 0
    %1020 = vmatprep.subr.bf16.mxu0 0
    %1021 = vmatpush1.bf16.msra.mxu0 %v1018
    %1022 = vmatprep.subr.bf16.mxu0 0
    %1023 = vmatpush1.bf16.msra.mxu0 0
    %1024 = vmatprep.subr.bf16.mxu0 0
    %1025 = vmatpush1.bf16.msra.mxu0 0
    %1026 = vmatprep.subr.bf16.mxu0 0
    %1027 = vmatpush1.bf16.msra.mxu0 0
    %1028 = vmatprep.subr.bf16.mxu0 0
    %1029 = vmatpush1.bf16.msra.mxu0 0
    %1030 = vmatprep.subr.bf16.mxu0 0
    %1031 = vmatpush1.bf16.msra.mxu0 0
    %1032 = vmatprep.subr.bf16.mxu0 0
    %1033 = vmatpush1.bf16.msra.mxu0 0
    %1034 = vmatprep.subr.bf16.mxu0 0
    %1035 = vmatpush1.bf16.msra.mxu0 0
    %1036 = vmatprep.subr.bf16.mxu0 0
    %1037 = vmatpush1.bf16.msra.mxu0 0
    %1038 = vmatprep.subr.bf16.mxu0 0
    %1039 = vmatpush1.bf16.msra.mxu0 0
    %1040 = vmatprep.subr.bf16.mxu0 0
    %1041 = vmatpush1.bf16.msra.mxu0 0
    %1042 = vmatprep.subr.bf16.mxu0 0
    %1043 = vmatpush1.bf16.msra.mxu0 0
    %1044 = vmatprep.subr.bf16.mxu0 0
    %1045 = vmatpush1.bf16.msra.mxu0 0
    %1046 = vmatprep.subr.bf16.mxu0 0
    %1047 = vmatpush1.bf16.msra.mxu0 0
    %1048 = vmatprep.subr.bf16.mxu0 0
    %1049 = vmatpush1.bf16.msra.mxu0 0
    %1050 = vmatprep.subr.bf16.mxu0 0
    %1051 = vmatpush1.bf16.msra.mxu0 0
    %1052 = vmatprep.mubr.bf16.mxu0 0
    %1053 = vmatmul.mubr.bf16.gmra.mrb[0].mxu0 %v1015
    %v1054 = vpop.f32.mrb[0].mxu0
    %v1055 = vadd.f32 0.0, %v1054
    %v1056 = vpop.f32.mrb[0].mxu0
    %v1057 = vpop.f32.mrb[0].mxu0
    %v1058 = vpop.f32.mrb[0].mxu0
    %1059 = vdwg.mxu0
    %1061 = vrot.lane.b32.xlu0 %v767, 8
    %v1062 = vpop.permute.xlu0 %1061
    %1065 = vrot.lane.b32.xlu0 %v815, 16
    %v1066 = vpop.permute.xlu0 %1065
    %1069 = vrot.lane.b32.xlu0 %v863, 24
    %v1070 = vpop.permute.xlu0 %1069
    %v1072 = vsel %vm181, %v719, %v1062
    %vm1073 = vcmask 130048
    %v1074 = vsel %vm1073, %v1072, %v1066
    %vm1075 = vcmask 195584
    %v1076 = vsel %vm1075, %v1074, %v1070
    %1078 = vrot.lane.b32.xlu0 %v959, 8
    %v1079 = vpop.permute.xlu0 %1078
    %1082 = vrot.lane.b32.xlu0 %v1007, 16
    %v1083 = vpop.permute.xlu0 %1082
    %1086 = vrot.lane.b32.xlu0 %v1055, 24
    %v1087 = vpop.permute.xlu0 %1086
    %v1089 = vsel %vm181, %v911, %v1079
    %v1090 = vsel %vm1073, %v1089, %v1083
    %v1091 = vsel %vm1075, %v1090, %v1087
    %v1092 = vpack.c.bf16 %v1091, %v1076
    %v1093 = vld [vmem:[%s3] sm:$0xff]
    %v1094 = vld [vmem:[%s3 + $0x8] sm:$0xff]
    %v1095 = vld [vmem:[%s3 + $0x10] sm:$0xff]
    %v1096 = vld [vmem:[%s3 + $0x18] sm:$0xff]
    %v1097 = vpack.c.bf16 %v1094, %v1093
    %v1098 = vpack.c.bf16 %v1096, %v1095
    %v1099 = vld [vmem:[%s4] sm:$0x1]
    %v1101 = vlaneseq
    %v1102 = vshrl.u32 %v1101, 7
    %v1103 = vsub.s32 0, %v1102
    %v1104 = vrot.slane %v1099, %v1103
    %v1107 = vsel %vm105, %v1092, 0
    %1109 = vmatprep.subr.bf16.mxu0 0
    %1110 = vmatpush1.bf16.msra.mxu0 %v1097
    %1111 = vmatprep.subr.bf16.mxu0 0
    %1112 = vmatpush1.bf16.msra.mxu0 %v1098
    %1113 = vmatprep.subr.bf16.mxu0 0
    %1114 = vmatpush1.bf16.msra.mxu0 0
    %1115 = vmatprep.subr.bf16.mxu0 0
    %1116 = vmatpush1.bf16.msra.mxu0 0
    %1117 = vmatprep.subr.bf16.mxu0 0
    %1118 = vmatpush1.bf16.msra.mxu0 0
    %1119 = vmatprep.subr.bf16.mxu0 0
    %1120 = vmatpush1.bf16.msra.mxu0 0
    %1121 = vmatprep.subr.bf16.mxu0 0
    %1122 = vmatpush1.bf16.msra.mxu0 0
    %1123 = vmatprep.subr.bf16.mxu0 0
    %1124 = vmatpush1.bf16.msra.mxu0 0
    %1125 = vmatprep.subr.bf16.mxu0 0
    %1126 = vmatpush1.bf16.msra.mxu0 0
    %1127 = vmatprep.subr.bf16.mxu0 0
    %1128 = vmatpush1.bf16.msra.mxu0 0
    %1129 = vmatprep.subr.bf16.mxu0 0
    %1130 = vmatpush1.bf16.msra.mxu0 0
    %1131 = vmatprep.subr.bf16.mxu0 0
    %1132 = vmatpush1.bf16.msra.mxu0 0
    %1133 = vmatprep.subr.bf16.mxu0 0
    %1134 = vmatpush1.bf16.msra.mxu0 0
    %1135 = vmatprep.subr.bf16.mxu0 0
    %1136 = vmatpush1.bf16.msra.mxu0 0
    %1137 = vmatprep.subr.bf16.mxu0 0
    %1138 = vmatpush1.bf16.msra.mxu0 0
    %1139 = vmatprep.subr.bf16.mxu0 0
    %1140 = vmatpush1.bf16.msra.mxu0 0
    %1141 = vmatprep.mubr.bf16.mxu0 0
    %1142 = vmatmul.mubr.bf16.gmra.mrb[0].mxu0 %v1107
    %v1143 = vpop.f32.mrb[0].mxu0
    %v1144 = vadd.f32 %v1104, %v1143
    %v1145 = vpop.f32.mrb[0].mxu0
    %v1146 = vpop.f32.mrb[0].mxu0
    %v1147 = vadd.f32 %v1104, %v1146
    %v1148 = vpop.f32.mrb[0].mxu0
    %1149 = vdwg.mxu0
    %v1150 = vadd.f32 %v89, %v1144
    %v1151 = vadd.f32 %v90, %v1147
    %v1152 = vld [vmem:[#allocation5] sm:$0x1]
    %v1153 = vld [vmem:[#allocation7] sm:$0x1]
    %v1154 = vsel %vm105, %v1150, 0.0
    %1155 = vadd.xlane.f32.xlu0 %v1154
    %v1156 = vpop.xlane.xlu0 %1155
    %v1157 = vsel %vm105, %v1151, 0.0
    %1158 = vadd.xlane.f32.xlu0 %v1157
    %v1159 = vpop.xlane.xlu0 %1158
    %v1160 = vrcp.pop 32.0
    %v1161 = vmul.f32 %v1156, %v1160
    %v1162 = vmul.f32 %v1159, %v1160
    %v1163 = vsub.f32 %v1150, %v1161
    %v1164 = vsub.f32 %v1151, %v1162
    %v1165 = vmul.f32 %v1163, %v1163
    %v1166 = vmul.f32 %v1164, %v1164
    %v1167 = vsel %vm105, %v1165, 0.0
    %1168 = vadd.xlane.f32.xlu0 %v1167
    %v1169 = vpop.xlane.xlu0 %1168
    %v1170 = vsel %vm105, %v1166, 0.0
    %1171 = vadd.xlane.f32.xlu0 %v1170
    %v1172 = vpop.xlane.xlu0 %1171
    %v1173 = vmul.f32 %v1169, %v1160
    %v1174 = vmul.f32 %v1172, %v1160
    %v1175 = vadd.f32 %v1173, 1e-05
    %v1176 = vadd.f32 %v1174, 1e-05
    %v1177 = vrsqrt.pop %v1175
    %v1178 = vrsqrt.pop %v1176
    %v1179 = vmul.f32 %v1163, %v1177
    %v1180 = vmul.f32 %v1164, %v1178
    %v1182 = vlaneseq
    %v1183 = vshrl.u32 %v1182, 7
    %v1184 = vsub.s32 0, %v1183
    %v1185 = vrot.slane %v1152, %v1184
    %v1187 = vmul.f32 %v1179, %v1185
    %v1188 = vmul.f32 %v1180, %v1185
    %v1190 = vlaneseq
    %v1191 = vshrl.u32 %v1190, 7
    %v1192 = vsub.s32 0, %v1191
    %v1193 = vrot.slane %v1153, %v1192
    %v1195 = vadd.f32 %v1187, %v1193
    %v1196 = vadd.f32 %v1188, %v1193
    %v1197 = vpack.c.bf16 %v1196, %v1195
    %v1198 = vld [vmem:[%s7] sm:$0xff]
    %v1199 = vld [vmem:[%s7 + $0x8] sm:$0xff]
    %v1200 = vld [vmem:[%s7 + $0x10] sm:$0xff]
    %v1201 = vld [vmem:[%s7 + $0x18] sm:$0xff]
    %v1202 = vpack.c.bf16 %v1199, %v1198
    %v1203 = vpack.c.bf16 %v1201, %v1200
    %v1204 = vld [vmem:[#allocation8] sm:$0x1]
    %v1206 = vlaneseq
    %v1207 = vshrl.u32 %v1206, 7
    %v1208 = vsub.s32 0, %v1207
    %v1209 = vrot.slane %v1204, %v1208
    %v1212 = vsel %vm105, %v1197, 0
    %1214 = vmatprep.subr.bf16.mxu0 0
    %1215 = vmatpush1.bf16.msra.mxu0 %v1202
    %1216 = vmatprep.subr.bf16.mxu0 0
    %1217 = vmatpush1.bf16.msra.mxu0 %v1203
    %1218 = vmatprep.subr.bf16.mxu0 0
    %1219 = vmatpush1.bf16.msra.mxu0 0
    %1220 = vmatprep.subr.bf16.mxu0 0
    %1221 = vmatpush1.bf16.msra.mxu0 0
    %1222 = vmatprep.subr.bf16.mxu0 0
    %1223 = vmatpush1.bf16.msra.mxu0 0
    %1224 = vmatprep.subr.bf16.mxu0 0
    %1225 = vmatpush1.bf16.msra.mxu0 0
    %1226 = vmatprep.subr.bf16.mxu0 0
    %1227 = vmatpush1.bf16.msra.mxu0 0
    %1228 = vmatprep.subr.bf16.mxu0 0
    %1229 = vmatpush1.bf16.msra.mxu0 0
    %1230 = vmatprep.subr.bf16.mxu0 0
    %1231 = vmatpush1.bf16.msra.mxu0 0
    %1232 = vmatprep.subr.bf16.mxu0 0
    %1233 = vmatpush1.bf16.msra.mxu0 0
    %1234 = vmatprep.subr.bf16.mxu0 0
    %1235 = vmatpush1.bf16.msra.mxu0 0
    %1236 = vmatprep.subr.bf16.mxu0 0
    %1237 = vmatpush1.bf16.msra.mxu0 0
    %1238 = vmatprep.subr.bf16.mxu0 0
    %1239 = vmatpush1.bf16.msra.mxu0 0
    %1240 = vmatprep.subr.bf16.mxu0 0
    %1241 = vmatpush1.bf16.msra.mxu0 0
    %1242 = vmatprep.subr.bf16.mxu0 0
    %1243 = vmatpush1.bf16.msra.mxu0 0
    %1244 = vmatprep.subr.bf16.mxu0 0
    %1245 = vmatpush1.bf16.msra.mxu0 0
    %1246 = vmatprep.mubr.bf16.mxu0 0
    %1247 = vmatmul.mubr.bf16.gmra.mrb[0].mxu0 %v1212
    %v1248 = vpop.f32.mrb[0].mxu0
    %v1249 = vadd.f32 %v1209, %v1248
    %v1250 = vpop.f32.mrb[0].mxu0
    %v1251 = vpop.f32.mrb[0].mxu0
    %v1252 = vadd.f32 %v1209, %v1251
    %v1253 = vpop.f32.mrb[0].mxu0
    %1254 = vdwg.mxu0
    %v1255 = vmax.f32 %v1249, 0.0
    %v1256 = vmax.f32 %v1252, 0.0
    %v1257 = vpack.c.bf16 %v1256, %v1255
    %v1258 = vld [vmem:[%s9] sm:$0xff]
    %v1259 = vld [vmem:[%s9 + $0x8] sm:$0xff]
    %v1260 = vld [vmem:[%s9 + $0x10] sm:$0xff]
    %v1261 = vld [vmem:[%s9 + $0x18] sm:$0xff]
    %v1262 = vld [vmem:[%s9 + $0x20] sm:$0xff]
    %v1263 = vld [vmem:[%s9 + $0x28] sm:$0xff]
    %v1264 = vld [vmem:[%s9 + $0x30] sm:$0xff]
    %v1265 = vld [vmem:[%s9 + $0x38] sm:$0xff]
    %v1266 = vpack.c.bf16 %v1259, %v1258
    %v1267 = vpack.c.bf16 %v1261, %v1260
    %v1268 = vpack.c.bf16 %v1263, %v1262
    %v1269 = vpack.c.bf16 %v1265, %v1264
    %v1270 = vld [vmem:[%s10] sm:$0x1]
    %v1272 = vlaneseq
    %v1273 = vshrl.u32 %v1272, 7
    %v1274 = vsub.s32 0, %v1273
    %v1275 = vrot.slane %v1270, %v1274
    %vm1277 = vcmask 523264
    %v1279 = vsel %vm1277, %v1257, 0
    %1281 = vmatprep.subr.bf16.mxu0 0
    %1282 = vmatpush1.bf16.msra.mxu0 %v1266
    %1283 = vmatprep.subr.bf16.mxu0 0
    %1284 = vmatpush1.bf16.msra.mxu0 %v1267
    %1285 = vmatprep.subr.bf16.mxu0 0
    %1286 = vmatpush1.bf16.msra.mxu0 %v1268
    %1287 = vmatprep.subr.bf16.mxu0 0
    %1288 = vmatpush1.bf16.msra.mxu0 %v1269
    %1289 = vmatprep.subr.bf16.mxu0 0
    %1290 = vmatpush1.bf16.msra.mxu0 0
    %1291 = vmatprep.subr.bf16.mxu0 0
    %1292 = vmatpush1.bf16.msra.mxu0 0
    %1293 = vmatprep.subr.bf16.mxu0 0
    %1294 = vmatpush1.bf16.msra.mxu0 0
    %1295 = vmatprep.subr.bf16.mxu0 0
    %1296 = vmatpush1.bf16.msra.mxu0 0
    %1297 = vmatprep.subr.bf16.mxu0 0
    %1298 = vmatpush1.bf16.msra.mxu0 0
    %1299 = vmatprep.subr.bf16.mxu0 0
    %1300 = vmatpush1.bf16.msra.mxu0 0
    %1301 = vmatprep.subr.bf16.mxu0 0
    %1302 = vmatpush1.bf16.msra.mxu0 0
    %1303 = vmatprep.subr.bf16.mxu0 0
    %1304 = vmatpush1.bf16.msra.mxu0 0
    %1305 = vmatprep.subr.bf16.mxu0 0
    %1306 = vmatpush1.bf16.msra.mxu0 0
    %1307 = vmatprep.subr.bf16.mxu0 0
    %1308 = vmatpush1.bf16.msra.mxu0 0
    %1309 = vmatprep.subr.bf16.mxu0 0
    %1310 = vmatpush1.bf16.msra.mxu0 0
    %1311 = vmatprep.subr.bf16.mxu0 0
    %1312 = vmatpush1.bf16.msra.mxu0 0
    %1313 = vmatprep.mubr.bf16.mxu0 0
    %1314 = vmatmul.mubr.bf16.gmra.mrb[0].mxu0 %v1279
    %v1315 = vpop.f32.mrb[0].mxu0
    %v1316 = vadd.f32 %v1275, %v1315
    %v1317 = vpop.f32.mrb[0].mxu0
    %v1318 = vpop.f32.mrb[0].mxu0
    %v1319 = vadd.f32 %v1275, %v1318
    %v1320 = vpop.f32.mrb[0].mxu0
    %1321 = vdwg.mxu0
    %v1322 = vadd.f32 %v1195, %v1316
    %v1323 = vadd.f32 %v1196, %v1319
    %v1324 = vsel %vm105, %v1322, 0.0
    %1325 = vadd.xlane.f32.xlu0 %v1324
    %v1326 = vpop.xlane.xlu0 %1325
    %v1327 = vsel %vm105, %v1323, 0.0
    %1328 = vadd.xlane.f32.xlu0 %v1327
    %v1329 = vpop.xlane.xlu0 %1328
    %v1330 = vmul.f32 %v1326, %v1160
    %v1331 = vmul.f32 %v1329, %v1160
    %v1332 = vsub.f32 %v1322, %v1330
    %v1333 = vsub.f32 %v1323, %v1331
    %v1334 = vmul.f32 %v1332, %v1332
    %v1335 = vmul.f32 %v1333, %v1333
    %v1336 = vsel %vm105, %v1334, 0.0
    %1337 = vadd.xlane.f32.xlu0 %v1336
    %v1338 = vpop.xlane.xlu0 %1337
    %v1339 = vsel %vm105, %v1335, 0.0
    %1340 = vadd.xlane.f32.xlu0 %v1339
    %v1341 = vpop.xlane.xlu0 %1340
    %v1342 = vmul.f32 %v1338, %v1160
    %v1343 = vmul.f32 %v1341, %v1160
    %v1344 = vadd.f32 %v1342, 1e-05
    %v1345 = vadd.f32 %v1343, 1e-05
    %v1346 = vrsqrt.pop %v1344
    %v1347 = vrsqrt.pop %v1345
    %v1348 = vmul.f32 %v1332, %v1346
    %v1349 = vmul.f32 %v1333, %v1347
    %v1350 = vmul.f32 %v1348, %v1185
    %v1351 = vmul.f32 %v1349, %v1185
    %v1352 = vadd.f32 %v1350, %v1193
    %v1353 = vadd.f32 %v1351, %v1193
    %1354 = vst.msk [vmem:[#allocation10] sm:$0xff] %vm105, %v1352
    %1355 = vst.msk [vmem:[#allocation10 + $0x8] sm:$0xff] %vm105, %v1353
    // Predicated region
    $region62: #{tpu_custom_call.1} parent=1 // pred_check
      _
    $region63: #{tpu_custom_call.1} parent=1 // pred_check_branch
      %1357 = sbr.rel (0) target = $region65
    $region64: #{tpu_custom_call.1} parent=1 // pred_region
      %s1359 = ssub.s32 256, 256
      %1360 = vsyncadd [#allocation4], %s1359
      %s1361 = sshll.u32 [#allocation10], 4
      %s1362 = int_to_ptr.vmem [resolvable:$true] %s1361
      %1367 = dma.vmem_to_hbm [thread:$0]  %s1362, 256, %s11, [#allocation4], 128, 128, 8
    $region65: #{tpu_custom_call.1} parent=1 // pred_fallthru
      _
    // Predicated region
    $region66: #{tpu_custom_call.1} parent=1 // pred_check
      _
    $region67: #{tpu_custom_call.1} parent=1 // pred_check_branch
      %1369 = sbr.rel (0) target = $region69
    $region68: #{tpu_custom_call.1} parent=1 // pred_region
      %1370 = dma.done [#allocation4], 256
    $region69: #{tpu_custom_call.1} parent=1 // pred_fallthru
      _
    %1371 = vsyncpa [#allocation3], 1
    %1372 = vsyncpa [#allocation6], 1
    %1373 = vsyncpa [#allocation9], 1
    %1374 = vsyncpa [#allocation4], 1

</llo_original>
